<compile_context>
chip_gen: v5e
topology: v5e:2x2
jax: 0.10.0
libtpu: 0.0.40
codegen_flags: <defaults>
</compile_context>

<pallas_src>
import math
import functools

import jax
import jax.numpy as jnp
import numpy as np
from jax import lax
from jax.experimental import pallas as pl
from jax.experimental.pallas import tpu as pltpu


# 48 MiB scoped VMEM: generous on v5e/v6e (128 MiB physical) and still within
# v7x's 64 MiB per-TensorCore budget.
_VMEM_LIMIT = 48 * 1024 * 1024


# --------------------------------------------------------------------------
# Kernel A: fused QKV projection; QKV index on an "arbitrary" grid axis so the
# resident weight block is (E, E).  x is cast f32 -> compute dtype in VMEM.
# --------------------------------------------------------------------------
def _qkv_proj_kernel(compute_dtype, x_ref, w_ref, b_ref, o_ref):
    # x_ref: (tm, E) f32 ; w_ref: (1, E, E) cdt ; b_ref: (1, 1, E) f32
    # o_ref: (1, tm, E) cdt
    x = x_ref[...].astype(compute_dtype)            # in-VMEM cast (no XLA pass)
    acc = jnp.dot(x, w_ref[0], preferred_element_type=jnp.float32) + b_ref[0]
    o_ref[0] = acc.astype(o_ref.dtype)


# --------------------------------------------------------------------------
# Kernel B: per-head attention, all heads per grid step, query-tiled.
# Outputs: attention in compute_dtype + tiny f32 per-token per-head norms
# (computed from the f32 accumulators, before the downcast).
# --------------------------------------------------------------------------
def _attention_kernel(num_heads, head_dim, q_ref, k_ref, v_ref, o_ref, n_ref):
    # q_ref: (1, 1, tq, E) cdt ; k_ref/v_ref: (1, 1, T, E) cdt
    # o_ref: (1, tq, E) cdt    ; n_ref: (1, tq, H) f32
    q = q_ref[0, 0]                   # scale already folded into W_q / b_q
    k = k_ref[0, 0]
    v = v_ref[0, 0]

    norm_cols = []
    # TODO(synk): for head_dim >= 128 prefer a head grid axis (DMA-side head
    # slicing) or a lax.fori_loop over a VMEM scratch to bound per-head live
    # ranges; at small head_dim the static lane slices below are the accepted
    # relayout cost.
    for h in range(num_heads):        # static loop over heads
        sl = slice(h * head_dim, (h + 1) * head_dim)
        qh, kh, vh = q[:, sl], k[:, sl], v[:, sl]
        # scores_h = q_h @ k_h^T  -> (tq, T), f32 accumulation on the MXU
        scores = lax.dot_general(qh, kh, (((1,), (1,)), ((), ())),
                                 preferred_element_type=jnp.float32)
        m = jnp.max(scores, axis=-1, keepdims=True)
        # TODO(synk): if a bundle dump shows the EUP exp as the binding slot on
        # v6e/v7x (small head_dim), compute exp in bf16 after the f32 subtract.
        p = jnp.exp(scores - m)
        inv_l = pl.reciprocal(jnp.sum(p, axis=-1, keepdims=True), approx=True)
        w = (p * inv_l).astype(vh.dtype)
        out_h = jnp.dot(w, vh, preferred_element_type=jnp.float32)  # (tq, Dh) f32
        # store this head's slice immediately (frees the f32 accumulator)
        o_ref[0, :, sl] = out_h.astype(o_ref.dtype)
        # per-token L2 norm of this head, in f32, from the f32 accumulator
        norm_cols.append(jnp.sqrt(jnp.sum(out_h * out_h, axis=-1, keepdims=True)))

    n_ref[0] = jnp.concatenate(norm_cols, axis=-1)   # (tq, H) f32, tiny


# --------------------------------------------------------------------------
# Kernel C: fused output projection (gate / H / s_h pre-folded into weights),
# weight columns tiled to (E, tn).
# --------------------------------------------------------------------------
def _out_proj_kernel(a_ref, w_ref, b_ref, o_ref):
    # a_ref: (tm, E) cdt ; w_ref: (E, tn) cdt ; b_ref: (1, tn) f32 ; o_ref: (tm, tn) f32
    o_ref[...] = (jnp.dot(a_ref[...], w_ref[...],
                          preferred_element_type=jnp.float32)
                  + b_ref[...]).astype(o_ref.dtype)


# --------------------------------------------------------------------------
# Tile pickers (hardened: never return an OOM-sized fallback for large dims)
# --------------------------------------------------------------------------
def _pick_row_tile(n, cap=512):
    """Largest divisor of n that is a multiple of 8 (or equals n for small n),
    capped at `cap`."""
    cap = min(cap, n)
    best = 1
    for t in range(1, cap + 1):
        if n % t == 0 and (t % 8 == 0 or t == n):
            best = t
    if best == 1:
        # TODO(synk): pad rows to a multiple of 8 + masked tail for odd shapes.
        for t in range(1, cap + 1):
            if n % t == 0:
                best = t
    return best


def _pick_col_tile(n, cap=512):
    """Largest multiple-of-128 divisor of n (<= cap), else the full dim
    (satisfies the (8,128) block constraint either way)."""
    t = min(cap, n) - (min(cap, n) % 128)
    while t >= 128:
        if n % t == 0:
            return t
        t -= 128
    return n


def _kv_block_spec(shape, index_map):
    """K/V blocks only change with the batch axis; single-buffer them to halve
    their VMEM residency (matters on v7x's 64 MiB).  Falls back gracefully on
    JAX versions without BlockSpec.pipeline_mode."""
    if hasattr(pl, "Buffered"):
        try:
            return pl.BlockSpec(shape, index_map, pipeline_mode=pl.Buffered(1))
        except TypeError:
            pass
    return pl.BlockSpec(shape, index_map)


# --------------------------------------------------------------------------
# Wrapper
# --------------------------------------------------------------------------
@functools.partial(jax.jit, static_argnames=("compute_dtype",))
def gated_mhsa_pallas(x, gate, wq, bq, wk, bk, wv, bv, wo, bo,
                      compute_dtype=jnp.float32):
    """x: (B, T, E) f32; gate: (H,); wq/wk/wv: (H, E, Dh); bq/bk/bv: (H, 1, Dh);
    wo: (H, Dh, E); bo: (H, 1, E).  compute_dtype: MXU operand dtype
    (jnp.float32 or jnp.bfloat16); softmax / norm math stays f32."""
    B, T, E = x.shape
    H = gate.shape[0]
    assert E % H == 0
    Dh = E // H
    M = B * T
    scale = 1.0 / math.sqrt(Dh)
    f32 = jnp.float32
    cdt = compute_dtype
    isz = jnp.dtype(cdt).itemsize

    # ---- host-side weight restructuring (tiny, amortised across calls) -----
    # (H, E, Dh) -> head-concatenated lane-dense (E, E); scale folded into Q.
    wq_all = jnp.transpose(wq, (1, 0, 2)).reshape(E, E) * scale
    wk_all = jnp.transpose(wk, (1, 0, 2)).reshape(E, E)
    wv_all = jnp.transpose(wv, (1, 0, 2)).reshape(E, E)
    w_qkv = jnp.stack([wq_all, wk_all, wv_all]).astype(cdt)       # (3, E, E)
    b_qkv = jnp.stack([bq.reshape(1, E) * scale, bk.reshape(1, E),
                       bv.reshape(1, E)]).astype(f32)             # (3, 1, E)

    # ---- kernel A: fused QKV projection ------------------------------------
    # grid = (qkv chunk, row tile); the (E, E) weight slab for chunk j stays
    # resident across the whole inner row sweep.
    tm = _pick_row_tile(M)
    x2d = x.reshape(M, E)                       # f32 in HBM; cast in-kernel
    qkv = pl.pallas_call(
        functools.partial(_qkv_proj_kernel, cdt),
        out_shape=jax.ShapeDtypeStruct((3, M, E), cdt),
        grid=(3, M // tm),
        in_specs=[pl.BlockSpec((tm, E), lambda j, i: (i, 0)),
                  pl.BlockSpec((1, E, E), lambda j, i: (j, 0, 0)),
                  pl.BlockSpec((1, 1, E), lambda j, i: (j, 0, 0))],
        out_specs=pl.BlockSpec((1, tm, E), lambda j, i: (j, i, 0)),
        compiler_params=pltpu.CompilerParams(
            dimension_semantics=("arbitrary", "parallel"),
            vmem_limit_bytes=_VMEM_LIMIT),
        cost_estimate=pl.CostEstimate(
            flops=6 * M * E * E, transcendentals=0,
            bytes_accessed=3 * M * E * 4 + 3 * E * E * isz + 3 * M * E * isz),
    )(x2d, w_qkv, b_qkv)

    qkv4 = qkv.reshape(3, B, T, E)              # free reshape; no extra pass

    # ---- kernel B: attention (all heads per step, query-tiled) -------------
    tq = _pick_row_tile(T)
    attn, norms = pl.pallas_call(
        functools.partial(_attention_kernel, H, Dh),
        out_shape=(jax.ShapeDtypeStruct((B, T, E), cdt),
                   jax.ShapeDtypeStruct((B, T, H), f32)),
        grid=(B, T // tq),
        in_specs=[pl.BlockSpec((1, 1, tq, E), lambda b, i: (0, b, i, 0)),
                  _kv_block_spec((1, 1, T, E), lambda b, i: (1, b, 0, 0)),
                  _kv_block_spec((1, 1, T, E), lambda b, i: (2, b, 0, 0))],
        out_specs=(pl.BlockSpec((1, tq, E), lambda b, i: (b, i, 0)),
                   pl.BlockSpec((1, tq, H), lambda b, i: (b, i, 0))),
        compiler_params=pltpu.CompilerParams(
            dimension_semantics=("parallel", "parallel"),
            vmem_limit_bytes=_VMEM_LIMIT),
        cost_estimate=pl.CostEstimate(
            flops=4 * B * T * T * E, transcendentals=B * H * T * T,
            bytes_accessed=4 * B * T * E * isz + B * T * H * 4),
    )(qkv4, qkv4, qkv4)

    # ---- cross-tile reduction from the tiny (B, T, H) f32 norm tensor ------
    #      s_h = max(mean_{B,T} ||out_h||_2, 1e-5)  — matches the reference.
    s = jnp.maximum(jnp.mean(norms, axis=(0, 1)), 1e-5)             # (H,)

    # ---- fold clip(gate), 1/H and 1/s_h into the output projection ---------
    gate_val = jnp.clip(gate, 0.0, 1.0)
    # TODO(synk): agency states (overloaded/misaligned/withdrawn) would scale
    # gate_val per head here; default module state is 'active' (factor 1.0).
    head_scale = gate_val / (H * s)                                  # (H,)
    wo_all = wo.reshape(E, E)                                        # rows head-concat
    wo_scaled = (wo_all * jnp.repeat(head_scale, Dh)[:, None]).astype(cdt)
    bo_fused = jnp.sum(bo.reshape(H, E) * (gate_val / H)[:, None],
                       axis=0).reshape(1, E).astype(f32)

    # ---- kernel C: fused output projection, column-tiled weights -----------
    tn = _pick_col_tile(E)
    attn2d = attn.reshape(M, E)          # already in compute dtype; no cast pass
    out2d = pl.pallas_call(
        _out_proj_kernel,
        out_shape=jax.ShapeDtypeStruct((M, E), f32),
        grid=(M // tm, E // tn),
        in_specs=[pl.BlockSpec((tm, E), lambda i, j: (i, 0)),
                  pl.BlockSpec((E, tn), lambda i, j: (0, j)),
                  pl.BlockSpec((1, tn), lambda i, j: (0, j))],
        out_specs=pl.BlockSpec((tm, tn), lambda i, j: (i, j)),
        compiler_params=pltpu.CompilerParams(
            dimension_semantics=("parallel", "arbitrary"),
            vmem_limit_bytes=_VMEM_LIMIT),
        cost_estimate=pl.CostEstimate(
            flops=2 * M * E * E, transcendentals=0,
            bytes_accessed=(M * E + E * E) * isz + M * E * 4 + E * 4),
    )(attn2d, wo_scaled, bo_fused)

    return out2d.reshape(B, T, E)


# --------------------------------------------------------------------------
# Pure-JAX reference (PyTorch forward, eval mode, all heads active/consenting)
# --------------------------------------------------------------------------
def gated_mhsa_reference(x, gate, wq, bq, wk, bk, wv, bv, wo, bo):
    B, T, E = x.shape
    H = gate.shape[0]
    Dh = E // H
    scale = 1.0 / math.sqrt(Dh)
    acc = jnp.zeros((B, T, E), jnp.float32)
    for i in range(H):
        q = x @ wq[i] + bq[i]
        k = x @ wk[i] + bk[i]
        v = x @ wv[i] + bv[i]
        scores = jnp.einsum('btd,bsd->bts', q, k) * scale
        w = jax.nn.softmax(scores, axis=-1)
        out = jnp.einsum('bts,bsd->btd', w, v)
        s = jnp.maximum(jnp.mean(jnp.linalg.norm(out, axis=-1)), 1e-5)
        gate_val = jnp.clip(gate[i], 0.0, 1.0)
        acc = acc + ((out / s) @ wo[i] + bo[i]) * gate_val
    return acc / H


if __name__ == "__main__":
    B, T, E, H = 2, 8, 32, 4
    Dh = E // H

    key = jax.random.PRNGKey(0)
    keys = jax.random.split(key, 10)
    bound = 1.0 / math.sqrt(E)      # nn.Linear default init range (E -> Dh)
    bound_o = 1.0 / math.sqrt(Dh)   # (Dh -> E)

    x = jax.random.normal(keys[0], (B, T, E), jnp.float32)
    wq = jax.random.uniform(keys[1], (H, E, Dh), jnp.float32, -bound, bound)
    bq = jax.random.uniform(keys[2], (H, 1, Dh), jnp.float32, -bound, bound)
    wk = jax.random.uniform(keys[3], (H, E, Dh), jnp.float32, -bound, bound)
    bk = jax.random.uniform(keys[4], (H, 1, Dh), jnp.float32, -bound, bound)
    wv = jax.random.uniform(keys[5], (H, E, Dh), jnp.float32, -bound, bound)
    bv = jax.random.uniform(keys[6], (H, 1, Dh), jnp.float32, -bound, bound)
    wo = jax.random.uniform(keys[7], (H, Dh, E), jnp.float32, -bound_o, bound_o)
    bo = jax.random.uniform(keys[8], (H, 1, E), jnp.float32, -bound_o, bound_o)
    gate = jnp.ones((H,), jnp.float32)   # gates initialised to 1.0 as in the module

    ref = gated_mhsa_reference(x, gate, wq, bq, wk, bk, wv, bv, wo, bo)

    # f32 MXU operands (tolerance covers the EUP approximate reciprocal).
    out_f32 = gated_mhsa_pallas(x, gate, wq, bq, wk, bk, wv, bv, wo, bo,
                                compute_dtype=jnp.float32)
    out_f32 = jax.block_until_ready(out_f32)
    np.testing.assert_allclose(np.asarray(out_f32), np.asarray(ref),
                               rtol=5e-3, atol=5e-3)

    # bf16 MXU operands + bf16 attention writeback (f32 accumulation, softmax
    # and norm math); looser tolerance.
    out_bf16 = gated_mhsa_pallas(x, gate, wq, bq, wk, bk, wv, bv, wo, bo,
                                 compute_dtype=jnp.bfloat16)
    out_bf16 = jax.block_until_ready(out_bf16)
    np.testing.assert_allclose(np.asarray(out_bf16), np.asarray(ref),
                               rtol=7e-2, atol=7e-2)

    print("KERNEL_OK")
</pallas_src>

<mosaic_0001>
module attributes {stable_mosaic.version = 11 : i64} {
  func.func @_qkv_proj_kernel(%arg0: i32, %arg1: i32, %arg2: memref<16x32xf32, #tpu.memory_space<vmem>>, %arg3: memref<1x32x32xf32, #tpu.memory_space<vmem>>, %arg4: memref<1x1x32xf32, #tpu.memory_space<vmem>>, %arg5: memref<1x16x32xf32, #tpu.memory_space<vmem>>) attributes {dimension_semantics = [#tpu.dimension_semantics<arbitrary>, #tpu.dimension_semantics<parallel>], iteration_bounds = array<i64: 3, 1>, scalar_prefetch = 0 : i64, scratch_operands = 0 : i64, tpu.core_type = #tpu.core_type<tc>, window_params = [{transform_indices = @transform_0, window_bounds = array<i64: 16, 32>}, {transform_indices = @transform_1, window_bounds = array<i64: 1, 32, 32>}, {transform_indices = @transform_2, window_bounds = array<i64: 1, 1, 32>}, {transform_indices = @transform_3, window_bounds = array<i64: 1, 16, 32>}]} {
    %c0 = arith.constant 0 : index
    %c0_0 = arith.constant 0 : index
    %0 = vector.load %arg2[%c0, %c0_0] : memref<16x32xf32, #tpu.memory_space<vmem>>, vector<16x32xf32>
    %c0_1 = arith.constant 0 : index
    %c0_2 = arith.constant 0 : index
    %c0_3 = arith.constant 0 : index
    %1 = vector.load %arg3[%c0_1, %c0_2, %c0_3] : memref<1x32x32xf32, #tpu.memory_space<vmem>>, vector<1x32x32xf32>
    %2 = vector.shape_cast %1 : vector<1x32x32xf32> to vector<32x32xf32>
    %cst = arith.constant dense<0.000000e+00> : vector<16x32xf32>
    %3 = tpu.matmul %0, %2, %cst {dimension_numbers = #tpu.dot_dimension_numbers<[1], [0], [0], [1], [0, 0, 1, 1], [], []>} : vector<16x32xf32>, vector<32x32xf32>, vector<16x32xf32> -> vector<16x32xf32>
    %c0_4 = arith.constant 0 : index
    %c0_5 = arith.constant 0 : index
    %c0_6 = arith.constant 0 : index
    %4 = vector.load %arg4[%c0_4, %c0_5, %c0_6] : memref<1x1x32xf32, #tpu.memory_space<vmem>>, vector<1x1x32xf32>
    %5 = vector.shape_cast %4 : vector<1x1x32xf32> to vector<1x32xf32>
    %6 = vector.broadcast %5 : vector<1x32xf32> to vector<16x32xf32>
    %7 = arith.addf %3, %6 : vector<16x32xf32>
    %c0_7 = arith.constant 0 : index
    %c0_8 = arith.constant 0 : index
    %c0_9 = arith.constant 0 : index
    %8 = vector.load %arg5[%c0_7, %c0_8, %c0_9] : memref<1x16x32xf32, #tpu.memory_space<vmem>>, vector<1x16x32xf32>
    %9 = vector.shape_cast %8 : vector<1x16x32xf32> to vector<16x32xf32>
    %10 = vector.shape_cast %7 : vector<16x32xf32> to vector<1x16x32xf32>
    tpu.vector_store %arg5[%c0_7, %c0_8, %c0_9], %10 {strides = array<i32>} : memref<1x16x32xf32, #tpu.memory_space<vmem>>, vector<1x16x32xf32>,
    return
  }
  func.func @transform_0(%arg0: i32, %arg1: i32) -> (i32, i32) {
    %c0_i32 = arith.constant 0 : i32
    %c0_i32_0 = arith.constant 0 : i32
    return %arg1, %c0_i32 : i32, i32
  }
  func.func @transform_1(%arg0: i32, %arg1: i32) -> (i32, i32, i32) {
    %c0_i32 = arith.constant 0 : i32
    %c0_i32_0 = arith.constant 0 : i32
    %c0_i32_1 = arith.constant 0 : i32
    return %arg0, %c0_i32, %c0_i32_0 : i32, i32, i32
  }
  func.func @transform_2(%arg0: i32, %arg1: i32) -> (i32, i32, i32) {
    %c0_i32 = arith.constant 0 : i32
    %c0_i32_0 = arith.constant 0 : i32
    %c0_i32_1 = arith.constant 0 : i32
    return %arg0, %c0_i32, %c0_i32_0 : i32, i32, i32
  }
  func.func @transform_3(%arg0: i32, %arg1: i32) -> (i32, i32, i32) {
    %c0_i32 = arith.constant 0 : i32
    %c0_i32_0 = arith.constant 0 : i32
    return %arg0, %arg1, %c0_i32 : i32, i32, i32
  }
}

module attributes {stable_mosaic.version = 11 : i64} {
  func.func @_attention_kernel(%arg0: i32, %arg1: i32, %arg2: memref<1x1x8x32xf32, #tpu.memory_space<vmem>>, %arg3: memref<1x1x8x32xf32, #tpu.memory_space<vmem>>, %arg4: memref<1x1x8x32xf32, #tpu.memory_space<vmem>>, %arg5: memref<1x8x32xf32, #tpu.memory_space<vmem>>, %arg6: memref<1x8x4xf32, #tpu.memory_space<vmem>>) attributes {dimension_semantics = [#tpu.dimension_semantics<parallel>, #tpu.dimension_semantics<parallel>], iteration_bounds = array<i64: 2, 1>, scalar_prefetch = 0 : i64, scratch_operands = 0 : i64, tpu.core_type = #tpu.core_type<tc>, window_params = [{transform_indices = @transform_0, window_bounds = array<i64: 1, 1, 8, 32>}, {pipeline_mode = #tpu.pipeline_mode<synchronous>, transform_indices = @transform_1, window_bounds = array<i64: 1, 1, 8, 32>}, {pipeline_mode = #tpu.pipeline_mode<synchronous>, transform_indices = @transform_2, window_bounds = array<i64: 1, 1, 8, 32>}, {transform_indices = @transform_3, window_bounds = array<i64: 1, 8, 32>}, {transform_indices = @transform_4, window_bounds = array<i64: 1, 8, 4>}]} {
    %c0 = arith.constant 0 : index
    %c0_0 = arith.constant 0 : index
    %c0_1 = arith.constant 0 : index
    %c0_2 = arith.constant 0 : index
    %0 = vector.load %arg2[%c0, %c0_0, %c0_1, %c0_2] : memref<1x1x8x32xf32, #tpu.memory_space<vmem>>, vector<1x1x8x32xf32>
    %1 = vector.shape_cast %0 : vector<1x1x8x32xf32> to vector<8x32xf32>
    %c0_3 = arith.constant 0 : index
    %c0_4 = arith.constant 0 : index
    %c0_5 = arith.constant 0 : index
    %c0_6 = arith.constant 0 : index
    %2 = vector.load %arg3[%c0_3, %c0_4, %c0_5, %c0_6] : memref<1x1x8x32xf32, #tpu.memory_space<vmem>>, vector<1x1x8x32xf32>
    %3 = vector.shape_cast %2 : vector<1x1x8x32xf32> to vector<8x32xf32>
    %c0_7 = arith.constant 0 : index
    %c0_8 = arith.constant 0 : index
    %c0_9 = arith.constant 0 : index
    %c0_10 = arith.constant 0 : index
    %4 = vector.load %arg4[%c0_7, %c0_8, %c0_9, %c0_10] : memref<1x1x8x32xf32, #tpu.memory_space<vmem>>, vector<1x1x8x32xf32>
    %5 = vector.shape_cast %4 : vector<1x1x8x32xf32> to vector<8x32xf32>
    %6 = vector.extract_strided_slice %1 {offsets = [0, 0], sizes = [8, 8], strides = [1, 1]} : vector<8x32xf32> to vector<8x8xf32>
    %7 = vector.extract_strided_slice %3 {offsets = [0, 0], sizes = [8, 8], strides = [1, 1]} : vector<8x32xf32> to vector<8x8xf32>
    %8 = vector.extract_strided_slice %5 {offsets = [0, 0], sizes = [8, 8], strides = [1, 1]} : vector<8x32xf32> to vector<8x8xf32>
    %cst = arith.constant dense<0.000000e+00> : vector<8x8xf32>
    %9 = tpu.matmul %6, %7, %cst {dimension_numbers = #tpu.dot_dimension_numbers<[1], [1], [0], [0], [0, 0, 1, 0], [], []>} : vector<8x8xf32>, vector<8x8xf32>, vector<8x8xf32> -> vector<8x8xf32>
    %cst_11 = arith.constant dense<0xFF800000> : vector<8xf32>
    %10 = vector.multi_reduction <maximumf>, %9, %cst_11 [1] : vector<8x8xf32> to vector<8xf32>
    %11 = vector.shape_cast %10 : vector<8xf32> to vector<8x1xf32>
    %12 = vector.broadcast %11 : vector<8x1xf32> to vector<8x8xf32>
    %13 = arith.subf %9, %12 : vector<8x8xf32>
    %14 = math.exp %13 : vector<8x8xf32>
    %cst_12 = arith.constant dense<0.000000e+00> : vector<8xf32>
    %15 = vector.multi_reduction <add>, %14, %cst_12 [1] : vector<8x8xf32> to vector<8xf32>
    %16 = vector.shape_cast %15 : vector<8xf32> to vector<8x1xf32>
    %17 = tpu.reciprocal %16 {approx = true} : vector<8x1xf32> -> vector<8x1xf32>
    %18 = vector.broadcast %17 : vector<8x1xf32> to vector<8x8xf32>
    %19 = arith.mulf %14, %18 : vector<8x8xf32>
    %cst_13 = arith.constant dense<0.000000e+00> : vector<8x8xf32>
    %20 = tpu.matmul %19, %8, %cst_13 {dimension_numbers = #tpu.dot_dimension_numbers<[1], [0], [0], [1], [0, 0, 1, 1], [], []>} : vector<8x8xf32>, vector<8x8xf32>, vector<8x8xf32> -> vector<8x8xf32>
    %c0_14 = arith.constant 0 : index
    %c0_15 = arith.constant 0 : index
    %c0_16 = arith.constant 0 : index
    %21 = vector.load %arg5[%c0_14, %c0_15, %c0_16] : memref<1x8x32xf32, #tpu.memory_space<vmem>>, vector<1x8x8xf32>
    %22 = vector.shape_cast %21 : vector<1x8x8xf32> to vector<8x8xf32>
    %23 = vector.shape_cast %20 : vector<8x8xf32> to vector<1x8x8xf32>
    tpu.vector_store %arg5[%c0_14, %c0_15, %c0_16], %23 {strides = array<i32>} : memref<1x8x32xf32, #tpu.memory_space<vmem>>, vector<1x8x8xf32>,
    %24 = arith.mulf %20, %20 : vector<8x8xf32>
    %cst_17 = arith.constant dense<0.000000e+00> : vector<8xf32>
    %25 = vector.multi_reduction <add>, %24, %cst_17 [1] : vector<8x8xf32> to vector<8xf32>
    %26 = vector.shape_cast %25 : vector<8xf32> to vector<8x1xf32>
    %27 = math.sqrt %26 : vector<8x1xf32>
    %28 = vector.extract_strided_slice %1 {offsets = [0, 8], sizes = [8, 8], strides = [1, 1]} : vector<8x32xf32> to vector<8x8xf32>
    %29 = vector.extract_strided_slice %3 {offsets = [0, 8], sizes = [8, 8], strides = [1, 1]} : vector<8x32xf32> to vector<8x8xf32>
    %30 = vector.extract_strided_slice %5 {offsets = [0, 8], sizes = [8, 8], strides = [1, 1]} : vector<8x32xf32> to vector<8x8xf32>
    %cst_18 = arith.constant dense<0.000000e+00> : vector<8x8xf32>
    %31 = tpu.matmul %28, %29, %cst_18 {dimension_numbers = #tpu.dot_dimension_numbers<[1], [1], [0], [0], [0, 0, 1, 0], [], []>} : vector<8x8xf32>, vector<8x8xf32>, vector<8x8xf32> -> vector<8x8xf32>
    %cst_19 = arith.constant dense<0xFF800000> : vector<8xf32>
    %32 = vector.multi_reduction <maximumf>, %31, %cst_19 [1] : vector<8x8xf32> to vector<8xf32>
    %33 = vector.shape_cast %32 : vector<8xf32> to vector<8x1xf32>
    %34 = vector.broadcast %33 : vector<8x1xf32> to vector<8x8xf32>
    %35 = arith.subf %31, %34 : vector<8x8xf32>
    %36 = math.exp %35 : vector<8x8xf32>
    %cst_20 = arith.constant dense<0.000000e+00> : vector<8xf32>
    %37 = vector.multi_reduction <add>, %36, %cst_20 [1] : vector<8x8xf32> to vector<8xf32>
    %38 = vector.shape_cast %37 : vector<8xf32> to vector<8x1xf32>
    %39 = tpu.reciprocal %38 {approx = true} : vector<8x1xf32> -> vector<8x1xf32>
    %40 = vector.broadcast %39 : vector<8x1xf32> to vector<8x8xf32>
    %41 = arith.mulf %36, %40 : vector<8x8xf32>
    %cst_21 = arith.constant dense<0.000000e+00> : vector<8x8xf32>
    %42 = tpu.matmul %41, %30, %cst_21 {dimension_numbers = #tpu.dot_dimension_numbers<[1], [0], [0], [1], [0, 0, 1, 1], [], []>} : vector<8x8xf32>, vector<8x8xf32>, vector<8x8xf32> -> vector<8x8xf32>
    %c0_22 = arith.constant 0 : index
    %c0_23 = arith.constant 0 : index
    %c8 = arith.constant 8 : index
    %43 = vector.load %arg5[%c0_22, %c0_23, %c8] : memref<1x8x32xf32, #tpu.memory_space<vmem>>, vector<1x8x8xf32>
    %44 = vector.shape_cast %43 : vector<1x8x8xf32> to vector<8x8xf32>
    %45 = vector.shape_cast %42 : vector<8x8xf32> to vector<1x8x8xf32>
    tpu.vector_store %arg5[%c0_22, %c0_23, %c8], %45 {strides = array<i32>} : memref<1x8x32xf32, #tpu.memory_space<vmem>>, vector<1x8x8xf32>,
    %46 = arith.mulf %42, %42 : vector<8x8xf32>
    %cst_24 = arith.constant dense<0.000000e+00> : vector<8xf32>
    %47 = vector.multi_reduction <add>, %46, %cst_24 [1] : vector<8x8xf32> to vector<8xf32>
    %48 = vector.shape_cast %47 : vector<8xf32> to vector<8x1xf32>
    %49 = math.sqrt %48 : vector<8x1xf32>
    %50 = vector.extract_strided_slice %1 {offsets = [0, 16], sizes = [8, 8], strides = [1, 1]} : vector<8x32xf32> to vector<8x8xf32>
    %51 = vector.extract_strided_slice %3 {offsets = [0, 16], sizes = [8, 8], strides = [1, 1]} : vector<8x32xf32> to vector<8x8xf32>
    %52 = vector.extract_strided_slice %5 {offsets = [0, 16], sizes = [8, 8], strides = [1, 1]} : vector<8x32xf32> to vector<8x8xf32>
    %cst_25 = arith.constant dense<0.000000e+00> : vector<8x8xf32>
    %53 = tpu.matmul %50, %51, %cst_25 {dimension_numbers = #tpu.dot_dimension_numbers<[1], [1], [0], [0], [0, 0, 1, 0], [], []>} : vector<8x8xf32>, vector<8x8xf32>, vector<8x8xf32> -> vector<8x8xf32>
    %cst_26 = arith.constant dense<0xFF800000> : vector<8xf32>
    %54 = vector.multi_reduction <maximumf>, %53, %cst_26 [1] : vector<8x8xf32> to vector<8xf32>
    %55 = vector.shape_cast %54 : vector<8xf32> to vector<8x1xf32>
    %56 = vector.broadcast %55 : vector<8x1xf32> to vector<8x8xf32>
    %57 = arith.subf %53, %56 : vector<8x8xf32>
    %58 = math.exp %57 : vector<8x8xf32>
    %cst_27 = arith.constant dense<0.000000e+00> : vector<8xf32>
    %59 = vector.multi_reduction <add>, %58, %cst_27 [1] : vector<8x8xf32> to vector<8xf32>
    %60 = vector.shape_cast %59 : vector<8xf32> to vector<8x1xf32>
    %61 = tpu.reciprocal %60 {approx = true} : vector<8x1xf32> -> vector<8x1xf32>
    %62 = vector.broadcast %61 : vector<8x1xf32> to vector<8x8xf32>
    %63 = arith.mulf %58, %62 : vector<8x8xf32>
    %cst_28 = arith.constant dense<0.000000e+00> : vector<8x8xf32>
    %64 = tpu.matmul %63, %52, %cst_28 {dimension_numbers = #tpu.dot_dimension_numbers<[1], [0], [0], [1], [0, 0, 1, 1], [], []>} : vector<8x8xf32>, vector<8x8xf32>, vector<8x8xf32> -> vector<8x8xf32>
    %c0_29 = arith.constant 0 : index
    %c0_30 = arith.constant 0 : index
    %c16 = arith.constant 16 : index
    %65 = vector.load %arg5[%c0_29, %c0_30, %c16] : memref<1x8x32xf32, #tpu.memory_space<vmem>>, vector<1x8x8xf32>
    %66 = vector.shape_cast %65 : vector<1x8x8xf32> to vector<8x8xf32>
    %67 = vector.shape_cast %64 : vector<8x8xf32> to vector<1x8x8xf32>
    tpu.vector_store %arg5[%c0_29, %c0_30, %c16], %67 {strides = array<i32>} : memref<1x8x32xf32, #tpu.memory_space<vmem>>, vector<1x8x8xf32>,
    %68 = arith.mulf %64, %64 : vector<8x8xf32>
    %cst_31 = arith.constant dense<0.000000e+00> : vector<8xf32>
    %69 = vector.multi_reduction <add>, %68, %cst_31 [1] : vector<8x8xf32> to vector<8xf32>
    %70 = vector.shape_cast %69 : vector<8xf32> to vector<8x1xf32>
    %71 = math.sqrt %70 : vector<8x1xf32>
    %72 = vector.extract_strided_slice %1 {offsets = [0, 24], sizes = [8, 8], strides = [1, 1]} : vector<8x32xf32> to vector<8x8xf32>
    %73 = vector.extract_strided_slice %3 {offsets = [0, 24], sizes = [8, 8], strides = [1, 1]} : vector<8x32xf32> to vector<8x8xf32>
    %74 = vector.extract_strided_slice %5 {offsets = [0, 24], sizes = [8, 8], strides = [1, 1]} : vector<8x32xf32> to vector<8x8xf32>
    %cst_32 = arith.constant dense<0.000000e+00> : vector<8x8xf32>
    %75 = tpu.matmul %72, %73, %cst_32 {dimension_numbers = #tpu.dot_dimension_numbers<[1], [1], [0], [0], [0, 0, 1, 0], [], []>} : vector<8x8xf32>, vector<8x8xf32>, vector<8x8xf32> -> vector<8x8xf32>
    %cst_33 = arith.constant dense<0xFF800000> : vector<8xf32>
    %76 = vector.multi_reduction <maximumf>, %75, %cst_33 [1] : vector<8x8xf32> to vector<8xf32>
    %77 = vector.shape_cast %76 : vector<8xf32> to vector<8x1xf32>
    %78 = vector.broadcast %77 : vector<8x1xf32> to vector<8x8xf32>
    %79 = arith.subf %75, %78 : vector<8x8xf32>
    %80 = math.exp %79 : vector<8x8xf32>
    %cst_34 = arith.constant dense<0.000000e+00> : vector<8xf32>
    %81 = vector.multi_reduction <add>, %80, %cst_34 [1] : vector<8x8xf32> to vector<8xf32>
    %82 = vector.shape_cast %81 : vector<8xf32> to vector<8x1xf32>
    %83 = tpu.reciprocal %82 {approx = true} : vector<8x1xf32> -> vector<8x1xf32>
    %84 = vector.broadcast %83 : vector<8x1xf32> to vector<8x8xf32>
    %85 = arith.mulf %80, %84 : vector<8x8xf32>
    %cst_35 = arith.constant dense<0.000000e+00> : vector<8x8xf32>
    %86 = tpu.matmul %85, %74, %cst_35 {dimension_numbers = #tpu.dot_dimension_numbers<[1], [0], [0], [1], [0, 0, 1, 1], [], []>} : vector<8x8xf32>, vector<8x8xf32>, vector<8x8xf32> -> vector<8x8xf32>
    %c0_36 = arith.constant 0 : index
    %c0_37 = arith.constant 0 : index
    %c24 = arith.constant 24 : index
    %87 = vector.load %arg5[%c0_36, %c0_37, %c24] : memref<1x8x32xf32, #tpu.memory_space<vmem>>, vector<1x8x8xf32>
    %88 = vector.shape_cast %87 : vector<1x8x8xf32> to vector<8x8xf32>
    %89 = vector.shape_cast %86 : vector<8x8xf32> to vector<1x8x8xf32>
    tpu.vector_store %arg5[%c0_36, %c0_37, %c24], %89 {strides = array<i32>} : memref<1x8x32xf32, #tpu.memory_space<vmem>>, vector<1x8x8xf32>,
    %90 = arith.mulf %86, %86 : vector<8x8xf32>
    %cst_38 = arith.constant dense<0.000000e+00> : vector<8xf32>
    %91 = vector.multi_reduction <add>, %90, %cst_38 [1] : vector<8x8xf32> to vector<8xf32>
    %92 = vector.shape_cast %91 : vector<8xf32> to vector<8x1xf32>
    %93 = math.sqrt %92 : vector<8x1xf32>
    %94 = tpu.concatenate %27, %49, %71, %93 in 1 : vector<8x1xf32>, vector<8x1xf32>, vector<8x1xf32>, vector<8x1xf32> -> vector<8x4xf32>
    %c0_39 = arith.constant 0 : index
    %c0_40 = arith.constant 0 : index
    %c0_41 = arith.constant 0 : index
    %95 = vector.load %arg6[%c0_39, %c0_40, %c0_41] : memref<1x8x4xf32, #tpu.memory_space<vmem>>, vector<1x8x4xf32>
    %96 = vector.shape_cast %95 : vector<1x8x4xf32> to vector<8x4xf32>
    %97 = vector.shape_cast %94 : vector<8x4xf32> to vector<1x8x4xf32>
    tpu.vector_store %arg6[%c0_39, %c0_40, %c0_41], %97 {strides = array<i32>} : memref<1x8x4xf32, #tpu.memory_space<vmem>>, vector<1x8x4xf32>,
    return
  }
  func.func @transform_0(%arg0: i32, %arg1: i32) -> (i32, i32, i32, i32) {
    %c0_i32 = arith.constant 0 : i32
    %c0_i32_0 = arith.constant 0 : i32
    %c0_i32_1 = arith.constant 0 : i32
    return %c0_i32, %arg0, %arg1, %c0_i32_0 : i32, i32, i32, i32
  }
  func.func @transform_1(%arg0: i32, %arg1: i32) -> (i32, i32, i32, i32) {
    %c1_i32 = arith.constant 1 : i32
    %c0_i32 = arith.constant 0 : i32
    %c0_i32_0 = arith.constant 0 : i32
    %c0_i32_1 = arith.constant 0 : i32
    return %c1_i32, %arg0, %c0_i32, %c0_i32_0 : i32, i32, i32, i32
  }
  func.func @transform_2(%arg0: i32, %arg1: i32) -> (i32, i32, i32, i32) {
    %c2_i32 = arith.constant 2 : i32
    %c0_i32 = arith.constant 0 : i32
    %c0_i32_0 = arith.constant 0 : i32
    %c0_i32_1 = arith.constant 0 : i32
    return %c2_i32, %arg0, %c0_i32, %c0_i32_0 : i32, i32, i32, i32
  }
  func.func @transform_3(%arg0: i32, %arg1: i32) -> (i32, i32, i32) {
    %c0_i32 = arith.constant 0 : i32
    %c0_i32_0 = arith.constant 0 : i32
    return %arg0, %arg1, %c0_i32 : i32, i32, i32
  }
  func.func @transform_4(%arg0: i32, %arg1: i32) -> (i32, i32, i32) {
    %c0_i32 = arith.constant 0 : i32
    %c0_i32_0 = arith.constant 0 : i32
    return %arg0, %arg1, %c0_i32 : i32, i32, i32
  }
}

module attributes {stable_mosaic.version = 11 : i64} {
  func.func @_out_proj_kernel(%arg0: i32, %arg1: i32, %arg2: memref<16x32xf32, #tpu.memory_space<vmem>>, %arg3: memref<32x32xf32, #tpu.memory_space<vmem>>, %arg4: memref<1x32xf32, #tpu.memory_space<vmem>>, %arg5: memref<16x32xf32, #tpu.memory_space<vmem>>) attributes {dimension_semantics = [#tpu.dimension_semantics<parallel>, #tpu.dimension_semantics<arbitrary>], iteration_bounds = array<i64: 1, 1>, scalar_prefetch = 0 : i64, scratch_operands = 0 : i64, tpu.core_type = #tpu.core_type<tc>, window_params = [{transform_indices = @transform_0, window_bounds = array<i64: 16, 32>}, {transform_indices = @transform_1, window_bounds = array<i64: 32, 32>}, {transform_indices = @transform_2, window_bounds = array<i64: 1, 32>}, {transform_indices = @transform_3, window_bounds = array<i64: 16, 32>}]} {
    %c0 = arith.constant 0 : index
    %c0_0 = arith.constant 0 : index
    %0 = vector.load %arg2[%c0, %c0_0] : memref<16x32xf32, #tpu.memory_space<vmem>>, vector<16x32xf32>
    %c0_1 = arith.constant 0 : index
    %c0_2 = arith.constant 0 : index
    %1 = vector.load %arg3[%c0_1, %c0_2] : memref<32x32xf32, #tpu.memory_space<vmem>>, vector<32x32xf32>
    %cst = arith.constant dense<0.000000e+00> : vector<16x32xf32>
    %2 = tpu.matmul %0, %1, %cst {dimension_numbers = #tpu.dot_dimension_numbers<[1], [0], [0], [1], [0, 0, 1, 1], [], []>} : vector<16x32xf32>, vector<32x32xf32>, vector<16x32xf32> -> vector<16x32xf32>
    %c0_3 = arith.constant 0 : index
    %c0_4 = arith.constant 0 : index
    %3 = vector.load %arg4[%c0_3, %c0_4] : memref<1x32xf32, #tpu.memory_space<vmem>>, vector<1x32xf32>
    %4 = vector.broadcast %3 : vector<1x32xf32> to vector<16x32xf32>
    %5 = arith.addf %2, %4 : vector<16x32xf32>
    %c0_5 = arith.constant 0 : index
    %c0_6 = arith.constant 0 : index
    %6 = vector.load %arg5[%c0_5, %c0_6] : memref<16x32xf32, #tpu.memory_space<vmem>>, vector<16x32xf32>
    tpu.vector_store %arg5[%c0_5, %c0_6], %5 {strides = array<i32>} : memref<16x32xf32, #tpu.memory_space<vmem>>, vector<16x32xf32>,
    return
  }
  func.func @transform_0(%arg0: i32, %arg1: i32) -> (i32, i32) {
    %c0_i32 = arith.constant 0 : i32
    %c0_i32_0 = arith.constant 0 : i32
    return %arg0, %c0_i32 : i32, i32
  }
  func.func @transform_1(%arg0: i32, %arg1: i32) -> (i32, i32) {
    %c0_i32 = arith.constant 0 : i32
    %c0_i32_0 = arith.constant 0 : i32
    return %c0_i32, %arg1 : i32, i32
  }
  func.func @transform_2(%arg0: i32, %arg1: i32) -> (i32, i32) {
    %c0_i32 = arith.constant 0 : i32
    %c0_i32_0 = arith.constant 0 : i32
    return %c0_i32, %arg1 : i32, i32
  }
  func.func @transform_3(%arg0: i32, %arg1: i32) -> (i32, i32) {
    %c0_i32 = arith.constant 0 : i32
    return %arg0, %arg1 : i32, i32
  }
}

</mosaic_0001>

<llo_original>
// kernel: mul.19
$region0: #{mul.19}
  %s0 = inlined_call_operand.vmem [shape: f32[4,8], index: 0, kind: input, shape index: {}]
  %s1 = inlined_call_operand.vmem [shape: f32[32], index: 1, kind: output, shape index: {}]
  $region1: #{mul.19} parent=0
    #allocation0 [shape = 'u8[4096]{0}', space=vmem, size = 0x1000, scoped, tag = 'scoped mem for output reshape']
    #allocation1 [shape = 'u8[4096]{0}', space=vmem, size = 0x1000, scoped, tag = 'scoped mem for input reshape']
    %s3 = ssub.s32 16, 1
    %v4 = vld [vmem:[%s0] sm:%s3]
    %5 = vst [vmem:[#allocation1] sm:%s3] %v4
    %v6 = vld [vmem:[#allocation1] sm:$0x1]
    %vm7 = vcmask 64512
    %8 = vst.msk [vmem:[#allocation0] sm:$0x1] %vm7, %v6
    %s9 = scalar_lea.vmem [#allocation1], 3
    %v10 = vld [vmem:[%s9] sm:$0x1]
    %11 = vrot.lane.b32.xlu0 %v10, 24
    %v12 = vpop.permute.xlu0 %11
    %vm13 = vcmask 261312
    %14 = vst.msk [vmem:[#allocation0] sm:$0x1] %vm13, %v12
    %s15 = scalar_lea.vmem [#allocation1], 2
    %v16 = vld [vmem:[%s15] sm:$0x1]
    %17 = vrot.lane.b32.xlu0 %v16, 16
    %v18 = vpop.permute.xlu0 %17
    %vm19 = vcmask 195712
    %20 = vst.msk [vmem:[#allocation0] sm:$0x1] %vm19, %v18
    %s21 = scalar_lea.vmem [#allocation1], 1
    %v22 = vld [vmem:[%s21] sm:$0x1]
    %23 = vrot.lane.b32.xlu0 %v22, 8
    %v24 = vpop.permute.xlu0 %23
    %vm25 = vcmask 130112
    %26 = vst.msk [vmem:[#allocation0] sm:$0x1] %vm25, %v24
    %s28 = ssub.s32 2, 1
    %v29 = vld [vmem:[#allocation0] sm:%s28]
    %s31 = ssub.s32 2, 1
    %32 = vst [vmem:[%s1] sm:%s31] %v29

// kernel: gated_mhsa_pallas.5
$region0: #{gated_mhsa_pallas.5}
  #allocation0 [shape = 'u32[]', space=smem, size = 0x4, offset = 0x4, fixed_abs, tag = 'smem constant byte address 0x4 - core index']
  #allocation1 [shape = 'u32[72,128]{1,0:T(1,128)}', space=vmem, size = 0x9000, scoped, tag = 'internal scratch']
  %s0 = inlined_call_operand.vmem [shape: f32[16,32], index: 0, kind: input, shape index: {}]
  %s1 = inlined_call_operand.vmem [shape: f32[32,32], index: 1, kind: input, shape index: {}]
  %s2 = inlined_call_operand.vmem [shape: f32[1,32], index: 2, kind: input, shape index: {}]
  %s3 = inlined_call_operand.hbm [shape: f32[16,32], index: 3, kind: output, shape index: {}]
  %s4 = sld [smem:[#allocation0]]
  $region22: #{gated_mhsa_pallas.5} parent=0
    _
  %s6 = ssub.s32 1, %s4
  %s7 = scalar_select 0, %s6, %s4
  $region1: #{gated_mhsa_pallas.5} parent=0
    #allocation2 [shape = 'u8[8192]{0}', space=vmem, size = 0x2000, scoped, tag = 'output window, operand 0, single buffered']
    #allocation3 [shape = 's32[1]{0}', space=sflag, size = 0x4, scoped, tag = 'scoped memory for gated_mhsa_pallas.5']
    %8 = vsyncpa [#allocation3], 0
    // Predicated region
    $region2: #{gated_mhsa_pallas.5} parent=1 // pred_check
      _
    $region3: #{gated_mhsa_pallas.5} parent=1 // pred_check_branch
      %10 = sbr.rel (0) target = $region5
    $region4: #{gated_mhsa_pallas.5} parent=1 // pred_region
      _
    $region5: #{gated_mhsa_pallas.5} parent=1 // pred_fallthru
      _
    // Predicated region
    $region6: #{gated_mhsa_pallas.5} parent=1 // pred_check
      _
    $region7: #{gated_mhsa_pallas.5} parent=1 // pred_check_branch
      %12 = sbr.rel (0) target = $region9
    $region8: #{gated_mhsa_pallas.5} parent=1 // pred_region
      _
    $region9: #{gated_mhsa_pallas.5} parent=1 // pred_fallthru
      _
    // Predicated region
    $region10: #{gated_mhsa_pallas.5} parent=1 // pred_check
      _
    $region11: #{gated_mhsa_pallas.5} parent=1 // pred_check_branch
      %14 = sbr.rel (0) target = $region13
    $region12: #{gated_mhsa_pallas.5} parent=1 // pred_region
      _
    $region13: #{gated_mhsa_pallas.5} parent=1 // pred_fallthru
      _
    %v15 = vld [vmem:[%s0] sm:$0xff]
    %v16 = vld [vmem:[%s0 + $0x8] sm:$0xff]
    %v17 = vld [vmem:[%s1] sm:$0xff]
    %v18 = vld [vmem:[%s1 + $0x8] sm:$0xff]
    %v19 = vld [vmem:[%s1 + $0x10] sm:$0xff]
    %v20 = vld [vmem:[%s1 + $0x18] sm:$0xff]
    %v21 = vld [vmem:[%s2] sm:$0x1]
    %v23 = vperm.slane %v21, 0
    %vm25 = vcmask 261120
    %v27 = vsel %vm25, %v15, 0
    %v30 = vsel %vm25, %v16, 0
    %32 = vmatpush.msra.mxu0 0.0
    %33 = vmatpush.msra.mxu0 0.0
    %34 = vmatpush.msra.mxu0 0.0
    %35 = vmatpush.msra.mxu0 0.0
    %36 = vmatpush.msra.mxu0 0.0
    %37 = vmatpush.msra.mxu0 0.0
    %38 = vmatpush.msra.mxu0 0.0
    %39 = vmatpush.msra.mxu0 0.0
    %40 = vmatpush.msra.mxu0 0.0
    %41 = vmatpush.msra.mxu0 0.0
    %42 = vmatpush.msra.mxu0 0.0
    %43 = vmatpush.msra.mxu0 0.0
    %44 = vmatpush.msra.mxu0 %v20
    %45 = vmatpush.msra.mxu0 %v19
    %46 = vmatpush.msra.mxu0 %v18
    %47 = vmatpush.msra.mxu0 %v17
    %48 = vmatmul.f32.gmra.mxu0 %v27
    %v49 = vpop.f32.mrf.mxu0
    %v50 = vadd.f32 %v23, %v49
    %51 = vmatmul.f32.gmra.mxu0 %v30
    %v52 = vpop.f32.mrf.mxu0
    %v53 = vadd.f32 %v23, %v52
    %54 = vdwg.mxu0
    %55 = vst.msk [vmem:[#allocation2] sm:$0xff] %vm25, %v50
    %56 = vst.msk [vmem:[#allocation2 + $0x8] sm:$0xff] %vm25, %v53
    // Predicated region
    $region14: #{gated_mhsa_pallas.5} parent=1 // pred_check
      _
    $region15: #{gated_mhsa_pallas.5} parent=1 // pred_check_branch
      %58 = sbr.rel (0) target = $region17
    $region16: #{gated_mhsa_pallas.5} parent=1 // pred_region
      %60 = vsyncadd [#allocation3], 0
      %s61 = sshll.u32 [#allocation2], 4
      %s62 = int_to_ptr.vmem [resolvable:$true] %s61
      %s63 = sshll.u32 %s3, 4
      %s64 = int_to_ptr.hbm [resolvable:$true] %s63
      %69 = dma.vmem_to_hbm [thread:$0]  %s62, 256, %s64, [#allocation3], 128, 128, 8
    $region17: #{gated_mhsa_pallas.5} parent=1 // pred_fallthru
      _
    // Predicated region
    $region18: #{gated_mhsa_pallas.5} parent=1 // pred_check
      _
    $region19: #{gated_mhsa_pallas.5} parent=1 // pred_check_branch
      %71 = sbr.rel (0) target = $region21
    $region20: #{gated_mhsa_pallas.5} parent=1 // pred_region
      %73 = dma.done [#allocation3], 256
    $region21: #{gated_mhsa_pallas.5} parent=1 // pred_fallthru
      _
    %74 = vsyncpa [#allocation3], 1

// kernel: gated_mhsa_pallas.3
$region0: #{gated_mhsa_pallas.3}
  #allocation0 [shape = 'u32[]', space=smem, size = 0x4, offset = 0x4, fixed_abs, tag = 'smem constant byte address 0x4 - core index']
  #allocation1 [shape = 'u32[72,128]{1,0:T(1,128)}', space=vmem, size = 0x9000, scoped, tag = 'internal scratch']
  %s0 = inlined_call_operand.vmem [shape: f32[16,32], index: 0, kind: input, shape index: {}]
  %s1 = inlined_call_operand.vmem [shape: f32[3,32,32], index: 1, kind: input, shape index: {}]
  %s2 = inlined_call_operand.vmem [shape: f32[3,1,32], index: 2, kind: input, shape index: {}]
  %s3 = inlined_call_operand.vmem [shape: f32[3,16,32], index: 3, kind: output, shape index: {}]
  %s4 = sld [smem:[#allocation0]]
  $region45: #{gated_mhsa_pallas.3} parent=0
    _
  %s6 = ssub.s32 1, %s4
  %s7 = scalar_select 0, %s6, %s4
  loop: start=0, step=1, limit=5
  $region2: #{gated_mhsa_pallas.3} parent=0 // loop_pre_header
    _
  $region3: #{gated_mhsa_pallas.3} parent=0 // loop_header
    %s9 = sphi 0, %s13
    %p10 = scmp.ge.s32.totalorder %s9, 5
    %s16 = sphi 0, %s28
    %s17 = sphi 0, %s24
    %s18 = sphi 0, %s16
    %s19 = sphi 0, %s17
    %s20 = sphi 0, %s18
    %s21 = sphi 0, %s19
    %s31 = sphi 0, %s33
    %s34 = sphi 0, %s31
    %s35 = sphi 0, %s34
    %s51 = sphi 0, %s35
    %s57 = sphi 0, %s59
    %s60 = sphi 0, %s57
    %s61 = sphi 0, %s60
    %s77 = sphi 0, %s61
    %s83 = sphi 0, %s85
    %s86 = sphi 0, %s83
    %s87 = sphi 0, %s86
    %s103 = sphi 0, %s87
    %s111 = sphi 0, %s113
    %s114 = sphi 0, %s111
    %s115 = sphi 0, %s114
    %s131 = sphi 0, %s115
  $region4: #{gated_mhsa_pallas.3} parent=0 // loop_header_branch
    %12 = sbr.rel (%p10) target = $region8
  $region5: #{gated_mhsa_pallas.3} parent=0 // loop_body
    %s14 = ssub.s32 %s9, 1
    %s15 = ssub.s32 %s9, 2
    %s22 = sadd.s32 1, %s17
    %p23 = scmp.ge.s32.totalorder %s22, 1
    %s24 = scalar_select %p23, 0, %s22
    %s25 = sadd.s32 1, %s16
    %s26 = scalar_select %p23, %s25, %s16
    %p27 = scmp.ge.s32.totalorder %s26, 3
    %s28 = scalar_select %p27, 0, %s26
    %s29 = ssub.s32 %s17, %s24
    %p30 = scmp.eq.s32.totalorder %s29, 0
    %s32 = sadd.s32 %s31, 1
    %s33 = scalar_select %p30, %s31, %s32
    %p36 = pneg %p30
    %p37 = scmp.eq.s32.totalorder %s9, 2
    %p38 = por %p36, %p37
    %p39 = scmp.ne.s32.totalorder %s31, %s34
    %p40 = scmp.eq.s32.totalorder %s9, 0
    %p41 = por %p39, %p40
    %p42 = scmp.ne.s32.totalorder %s31, %s34
    %p43 = scmp.eq.s32.totalorder %s14, 2
    %p44 = por %p42, %p43
    %p45 = scmp.ne.s32.totalorder %s34, %s35
    %p46 = scmp.eq.s32.totalorder %s14, 0
    %p47 = por %p45, %p46
    %p48 = scmp.ne.s32.totalorder %s34, %s35
    %p49 = scmp.eq.s32.totalorder %s15, 2
    %p50 = por %p48, %p49
    %p52 = scmp.ne.s32.totalorder %s35, %s51
    %p53 = scmp.eq.s32.totalorder %s15, 0
    %p54 = por %p52, %p53
    %s55 = ssub.s32 %s16, %s28
    %p56 = scmp.eq.s32.totalorder %s55, 0
    %s58 = sadd.s32 %s57, 1
    %s59 = scalar_select %p56, %s57, %s58
    %p62 = pneg %p56
    %p63 = scmp.eq.s32.totalorder %s9, 2
    %p64 = por %p62, %p63
    %p65 = scmp.ne.s32.totalorder %s57, %s60
    %p66 = scmp.eq.s32.totalorder %s9, 0
    %p67 = por %p65, %p66
    %p68 = scmp.ne.s32.totalorder %s57, %s60
    %p69 = scmp.eq.s32.totalorder %s14, 2
    %p70 = por %p68, %p69
    %p71 = scmp.ne.s32.totalorder %s60, %s61
    %p72 = scmp.eq.s32.totalorder %s14, 0
    %p73 = por %p71, %p72
    %p74 = scmp.ne.s32.totalorder %s60, %s61
    %p75 = scmp.eq.s32.totalorder %s15, 2
    %p76 = por %p74, %p75
    %p78 = scmp.ne.s32.totalorder %s61, %s77
    %p79 = scmp.eq.s32.totalorder %s15, 0
    %p80 = por %p78, %p79
    %s81 = ssub.s32 %s16, %s28
    %p82 = scmp.eq.s32.totalorder %s81, 0
    %s84 = sadd.s32 %s83, 1
    %s85 = scalar_select %p82, %s83, %s84
    %p88 = pneg %p82
    %p89 = scmp.eq.s32.totalorder %s9, 2
    %p90 = por %p88, %p89
    %p91 = scmp.ne.s32.totalorder %s83, %s86
    %p92 = scmp.eq.s32.totalorder %s9, 0
    %p93 = por %p91, %p92
    %p94 = scmp.ne.s32.totalorder %s83, %s86
    %p95 = scmp.eq.s32.totalorder %s14, 2
    %p96 = por %p94, %p95
    %p97 = scmp.ne.s32.totalorder %s86, %s87
    %p98 = scmp.eq.s32.totalorder %s14, 0
    %p99 = por %p97, %p98
    %p100 = scmp.ne.s32.totalorder %s86, %s87
    %p101 = scmp.eq.s32.totalorder %s15, 2
    %p102 = por %p100, %p101
    %p104 = scmp.ne.s32.totalorder %s87, %s103
    %p105 = scmp.eq.s32.totalorder %s15, 0
    %p106 = por %p104, %p105
    %s107 = ssub.s32 %s16, %s28
    %s108 = ssub.s32 %s17, %s24
    %s109 = sor.u32 %s107, %s108
    %p110 = scmp.eq.s32.totalorder %s109, 0
    %s112 = sadd.s32 %s111, 1
    %s113 = scalar_select %p110, %s111, %s112
    %p116 = pneg %p110
    %p117 = scmp.eq.s32.totalorder %s9, 2
    %p118 = por %p116, %p117
    %p119 = scmp.ne.s32.totalorder %s111, %s114
    %p120 = scmp.eq.s32.totalorder %s9, 0
    %p121 = por %p119, %p120
    %p122 = scmp.ne.s32.totalorder %s111, %s114
    %p123 = scmp.eq.s32.totalorder %s14, 2
    %p124 = por %p122, %p123
    %p125 = scmp.ne.s32.totalorder %s114, %s115
    %p126 = scmp.eq.s32.totalorder %s14, 0
    %p127 = por %p125, %p126
    %p128 = scmp.ne.s32.totalorder %s114, %s115
    %p129 = scmp.eq.s32.totalorder %s15, 2
    %p130 = por %p128, %p129
    %p132 = scmp.ne.s32.totalorder %s115, %s131
    %p133 = scmp.eq.s32.totalorder %s15, 0
    %p134 = por %p132, %p133
    %p135 = scmp.le.s32.totalorder 1, %s9
    %p136 = scmp.lt.s32.totalorder %s9, 4
    %p137 = pnand %p135, %p136
    %p138 = pneg %p137
    // Predicated region
    $region9: #{gated_mhsa_pallas.3} parent=5 // pred_check
      _
    $region10: #{gated_mhsa_pallas.3} parent=5 // pred_check_branch
      %140 = sbr.rel (%p137) target = $region12
    $region11: #{gated_mhsa_pallas.3} parent=5 // pred_region
      %s141 = ssub.s32 %s9, 1
      // Predicated region
      $region13: #{gated_mhsa_pallas.3} parent=11 // pred_check
        %p142 = pneg %p47
      $region14: #{gated_mhsa_pallas.3} parent=11 // pred_check_branch
        %144 = sbr.rel (%p142) target = $region16
      $region15: #{gated_mhsa_pallas.3} parent=11 // pred_region
        %s145 = smul.u32 2, %s19
        %p146 = scmp.lt.s32.totalorder %s145, 1
        %s147 = scalar_select %p146, %s145, 1
        %s148 = smul.addr %s147, 8
        %s149 = scalar_lea.vmem %s0, %s148
        %s150 = smul.u32 2, %s19
      $region16: #{gated_mhsa_pallas.3} parent=11 // pred_fallthru
        _
    $region12: #{gated_mhsa_pallas.3} parent=5 // pred_fallthru
      _
    %p151 = scmp.lt.s32.totalorder %s9, 3
    // Predicated region
    $region17: #{gated_mhsa_pallas.3} parent=5 // pred_check
      %p152 = pneg %p151
    $region18: #{gated_mhsa_pallas.3} parent=5 // pred_check_branch
      %154 = sbr.rel (%p152) target = $region20
    $region19: #{gated_mhsa_pallas.3} parent=5 // pred_region
      // Predicated region
      $region21: #{gated_mhsa_pallas.3} parent=19 // pred_check
        %p155 = pneg %p67
      $region22: #{gated_mhsa_pallas.3} parent=19 // pred_check_branch
        %157 = sbr.rel (%p155) target = $region24
      $region23: #{gated_mhsa_pallas.3} parent=19 // pred_region
        %p158 = scmp.lt.s32.totalorder %s16, 2
        %s159 = scalar_select %p158, %s16, 2
        %s160 = smul.addr %s159, 4
        %s161 = smul.addr %s160, 8
        %s162 = scalar_lea.vmem %s1, %s161
      $region24: #{gated_mhsa_pallas.3} parent=19 // pred_fallthru
        _
      // Predicated region
      $region25: #{gated_mhsa_pallas.3} parent=19 // pred_check
        %p163 = pneg %p93
      $region26: #{gated_mhsa_pallas.3} parent=19 // pred_check_branch
        %165 = sbr.rel (%p163) target = $region28
      $region27: #{gated_mhsa_pallas.3} parent=19 // pred_region
        %p166 = scmp.lt.s32.totalorder %s16, 2
        %s167 = scalar_select %p166, %s16, 2
        %s168 = scalar_lea.vmem %s2, %s167
      $region28: #{gated_mhsa_pallas.3} parent=19 // pred_fallthru
        _
    $region20: #{gated_mhsa_pallas.3} parent=5 // pred_fallthru
      _
    %p169 = scmp.le.s32.totalorder 1, %s9
    %p170 = scmp.lt.s32.totalorder %s9, 4
    %p171 = pnand %p169, %p170
    %p172 = pneg %p171
    // Predicated region
    $region29: #{gated_mhsa_pallas.3} parent=5 // pred_check
      _
    $region30: #{gated_mhsa_pallas.3} parent=5 // pred_check_branch
      %174 = sbr.rel (%p171) target = $region32
    $region31: #{gated_mhsa_pallas.3} parent=5 // pred_region
      %s175 = ssub.s32 %s9, 1
      %s176 = smul.u32 2, %s19
      %p177 = scmp.lt.s32.totalorder %s176, 1
      %s178 = scalar_select %p177, %s176, 1
      %s179 = smul.addr %s178, 8
      %s180 = scalar_lea.vmem %s0, %s179
      %p181 = pneg %p47
      %p182 = pneg %p44
      %p183 = scmp.lt.s32.totalorder %s18, 2
      %s184 = scalar_select %p183, %s18, 2
      %s185 = smul.addr %s184, 4
      %s186 = smul.addr %s185, 8
      %s187 = scalar_lea.vmem %s1, %s186
      %p188 = pneg %p73
      %p189 = pneg %p70
      %p190 = scmp.lt.s32.totalorder %s18, 2
      %s191 = scalar_select %p190, %s18, 2
      %s192 = scalar_lea.vmem %s2, %s191
      %p193 = pneg %p99
      %p194 = pneg %p96
      %p195 = pneg %p127
      %p196 = pneg %p124
      %s197 = smul.u32 2, %s19
      %p198 = scmp.lt.s32.totalorder %s18, 2
      %s199 = scalar_select %p198, %s18, 2
      %p200 = scmp.lt.s32.totalorder %s197, 1
      %s201 = scalar_select %p200, %s197, 1
      %s202 = smul.addr %s199, 2
      %s203 = sadd.s32 %s201, %s202
      %s204 = smul.addr %s203, 8
      %s205 = scalar_lea.vmem %s3, %s204
      %s206 = smul.u32 2, %s19
      %p207 = scmp.lt.s32.totalorder %s206, 1
      %s208 = scalar_select %p207, %s206, 1
      %s209 = smul.addr %s208, 8
      %s210 = scalar_lea.vmem %s0, %s209
      %s211 = smul.u32 2, %s19
      %p212 = scmp.lt.s32.totalorder %s18, 2
      %s213 = scalar_select %p212, %s18, 2
      %s214 = smul.addr %s213, 4
      %s215 = smul.addr %s214, 8
      %s216 = scalar_lea.vmem %s1, %s215
      %p217 = scmp.lt.s32.totalorder %s18, 2
      %s218 = scalar_select %p217, %s18, 2
      %s219 = scalar_lea.vmem %s2, %s218
      %s220 = smul.u32 2, %s19
      %p221 = scmp.lt.s32.totalorder %s18, 2
      %s222 = scalar_select %p221, %s18, 2
      %p223 = scmp.lt.s32.totalorder %s220, 1
      %s224 = scalar_select %p223, %s220, 1
      %s225 = smul.addr %s222, 2
      %s226 = sadd.s32 %s224, %s225
      %s227 = smul.addr %s226, 8
      %s228 = scalar_lea.vmem %s3, %s227
      %s229 = smul.u32 2, %s19
      %v230 = vld [vmem:[%s210] sm:$0xff]
      %v231 = vld [vmem:[%s210 + $0x8] sm:$0xff]
      %v232 = vld [vmem:[%s216] sm:$0xff]
      %v233 = vld [vmem:[%s216 + $0x8] sm:$0xff]
      %v234 = vld [vmem:[%s216 + $0x10] sm:$0xff]
      %v235 = vld [vmem:[%s216 + $0x18] sm:$0xff]
      %v236 = vld [vmem:[%s219] sm:$0x1]
      %v238 = vperm.slane %v236, 0
      %vm240 = vcmask 261120
      %v242 = vsel %vm240, %v230, 0
      %v245 = vsel %vm240, %v231, 0
      %247 = vmatpush.msra.mxu0 0.0
      %248 = vmatpush.msra.mxu0 0.0
      %249 = vmatpush.msra.mxu0 0.0
      %250 = vmatpush.msra.mxu0 0.0
      %251 = vmatpush.msra.mxu0 0.0
      %252 = vmatpush.msra.mxu0 0.0
      %253 = vmatpush.msra.mxu0 0.0
      %254 = vmatpush.msra.mxu0 0.0
      %255 = vmatpush.msra.mxu0 0.0
      %256 = vmatpush.msra.mxu0 0.0
      %257 = vmatpush.msra.mxu0 0.0
      %258 = vmatpush.msra.mxu0 0.0
      %259 = vmatpush.msra.mxu0 %v235
      %260 = vmatpush.msra.mxu0 %v234
      %261 = vmatpush.msra.mxu0 %v233
      %262 = vmatpush.msra.mxu0 %v232
      %263 = vmatmul.f32.gmra.mxu0 %v242
      %v264 = vpop.f32.mrf.mxu0
      %v265 = vadd.f32 %v238, %v264
      %266 = vmatmul.f32.gmra.mxu0 %v245
      %v267 = vpop.f32.mrf.mxu0
      %v268 = vadd.f32 %v238, %v267
      %269 = vdwg.mxu0
      %270 = vst.msk [vmem:[%s228] sm:$0xff] %vm240, %v265
      %271 = vst.msk [vmem:[%s228 + $0x8] sm:$0xff] %vm240, %v268
      %s272 = smul.u32 2, %s19
      %p273 = scmp.lt.s32.totalorder %s18, 2
      %s274 = scalar_select %p273, %s18, 2
      %p275 = scmp.lt.s32.totalorder %s272, 1
      %s276 = scalar_select %p275, %s272, 1
      %s277 = smul.addr %s274, 2
      %s278 = sadd.s32 %s276, %s277
      %s279 = smul.addr %s278, 8
      %s280 = scalar_lea.vmem %s3, %s279
      // Predicated region
      $region33: #{gated_mhsa_pallas.3} parent=31 // pred_check
        %p281 = pneg %p124
      $region34: #{gated_mhsa_pallas.3} parent=31 // pred_check_branch
        %283 = sbr.rel (%p281) target = $region36
      $region35: #{gated_mhsa_pallas.3} parent=31 // pred_region
        %s284 = smul.u32 2, %s19
      $region36: #{gated_mhsa_pallas.3} parent=31 // pred_fallthru
        _
    $region32: #{gated_mhsa_pallas.3} parent=5 // pred_fallthru
      _
    %p285 = scmp.le.s32.totalorder 2, %s9
    // Predicated region
    $region37: #{gated_mhsa_pallas.3} parent=5 // pred_check
      %p286 = pneg %p285
    $region38: #{gated_mhsa_pallas.3} parent=5 // pred_check_branch
      %288 = sbr.rel (%p286) target = $region40
    $region39: #{gated_mhsa_pallas.3} parent=5 // pred_region
      %s289 = ssub.s32 %s9, 2
      // Predicated region
      $region41: #{gated_mhsa_pallas.3} parent=39 // pred_check
        %p290 = pneg %p130
      $region42: #{gated_mhsa_pallas.3} parent=39 // pred_check_branch
        %292 = sbr.rel (%p290) target = $region44
      $region43: #{gated_mhsa_pallas.3} parent=39 // pred_region
        %s293 = smul.u32 2, %s21
        %p294 = scmp.lt.s32.totalorder %s20, 2
        %s295 = scalar_select %p294, %s20, 2
        %p296 = scmp.lt.s32.totalorder %s293, 1
        %s297 = scalar_select %p296, %s293, 1
        %s298 = smul.addr %s295, 2
        %s299 = sadd.s32 %s297, %s298
        %s300 = smul.addr %s299, 8
        %s301 = scalar_lea.vmem %s3, %s300
      $region44: #{gated_mhsa_pallas.3} parent=39 // pred_fallthru
        _
    $region40: #{gated_mhsa_pallas.3} parent=5 // pred_fallthru
      _
  $region6: #{gated_mhsa_pallas.3} parent=0 // loop_footer
    %s13 = sadd.s32 1, %s9
  $region7: #{gated_mhsa_pallas.3} parent=0 // loop_footer_branch
    %8 = sbr.rel target = $region3
  $region8: #{gated_mhsa_pallas.3} parent=0 // loop_exit
    _

// kernel: gated_mhsa_pallas.4
$region0: #{gated_mhsa_pallas.4}
  #allocation0 [shape = 'u32[]', space=smem, size = 0x4, offset = 0x4, fixed_abs, tag = 'smem constant byte address 0x4 - core index']
  #allocation1 [shape = 'u32[72,128]{1,0:T(1,128)}', space=vmem, size = 0x9000, scoped, tag = 'internal scratch']
  %s0 = inlined_call_operand.vmem [shape: f32[3,2,8,32], index: 0, kind: input, shape index: {}, may-alias: {0,1,2}]
  %s1 = inlined_call_operand.vmem [shape: f32[3,2,8,32], index: 1, kind: input, shape index: {}, may-alias: {0,1,2}]
  %s2 = inlined_call_operand.vmem [shape: f32[3,2,8,32], index: 2, kind: input, shape index: {}, may-alias: {0,1,2}]
  %s3 = inlined_call_operand.vmem [shape: f32[2,8,32], index: 3, kind: output, shape index: {0}]
  %s4 = inlined_call_operand.vmem [shape: f32[2,8,4], index: 4, kind: output, shape index: {1}]
  %5 = xla_tuple %s3, %s4
  %s6 = sld [smem:[#allocation0]]
  $region53: #{gated_mhsa_pallas.4} parent=0
    _
  %s8 = ssub.s32 1, %s6
  %s9 = scalar_select 0, %s8, %s6
  loop: start=0, step=1, limit=4
  $region2: #{gated_mhsa_pallas.4} parent=0 // loop_pre_header
    _
  $region3: #{gated_mhsa_pallas.4} parent=0 // loop_header
    %s11 = sphi 0, %s15
    %p12 = scmp.ge.s32.totalorder %s11, 4
    %s18 = sphi 0, %s30
    %s19 = sphi 0, %s26
    %s20 = sphi 0, %s18
    %s21 = sphi 0, %s19
    %s22 = sphi 0, %s20
    %s23 = sphi 0, %s21
    %s35 = sphi 0, %s37
    %s38 = sphi 0, %s35
    %s39 = sphi 0, %s38
    %s55 = sphi 0, %s39
    %s61 = sphi 0, %s63
    %s64 = sphi 0, %s61
    %s65 = sphi 0, %s64
    %s81 = sphi 0, %s65
    %s87 = sphi 0, %s89
    %s90 = sphi 0, %s87
    %s91 = sphi 0, %s90
    %s107 = sphi 0, %s91
    %s115 = sphi 0, %s117
    %s118 = sphi 0, %s115
    %s119 = sphi 0, %s118
    %s135 = sphi 0, %s119
    %s143 = sphi 0, %s145
    %s146 = sphi 0, %s143
    %s147 = sphi 0, %s146
    %s163 = sphi 0, %s147
  $region4: #{gated_mhsa_pallas.4} parent=0 // loop_header_branch
    %14 = sbr.rel (%p12) target = $region8
  $region5: #{gated_mhsa_pallas.4} parent=0 // loop_body
    %s16 = ssub.s32 %s11, 1
    %s17 = ssub.s32 %s11, 2
    %s24 = sadd.s32 1, %s19
    %p25 = scmp.ge.s32.totalorder %s24, 1
    %s26 = scalar_select %p25, 0, %s24
    %s27 = sadd.s32 1, %s18
    %s28 = scalar_select %p25, %s27, %s18
    %p29 = scmp.ge.s32.totalorder %s28, 2
    %s30 = scalar_select %p29, 0, %s28
    %s31 = ssub.s32 %s18, %s30
    %s32 = ssub.s32 %s19, %s26
    %s33 = sor.u32 %s31, %s32
    %p34 = scmp.eq.s32.totalorder %s33, 0
    %s36 = sadd.s32 %s35, 1
    %s37 = scalar_select %p34, %s35, %s36
    %p40 = pneg %p34
    %p41 = scmp.eq.s32.totalorder %s11, 1
    %p42 = por %p40, %p41
    %p43 = scmp.ne.s32.totalorder %s35, %s38
    %p44 = scmp.eq.s32.totalorder %s11, 0
    %p45 = por %p43, %p44
    %p46 = scmp.ne.s32.totalorder %s35, %s38
    %p47 = scmp.eq.s32.totalorder %s16, 1
    %p48 = por %p46, %p47
    %p49 = scmp.ne.s32.totalorder %s38, %s39
    %p50 = scmp.eq.s32.totalorder %s16, 0
    %p51 = por %p49, %p50
    %p52 = scmp.ne.s32.totalorder %s38, %s39
    %p53 = scmp.eq.s32.totalorder %s17, 1
    %p54 = por %p52, %p53
    %p56 = scmp.ne.s32.totalorder %s39, %s55
    %p57 = scmp.eq.s32.totalorder %s17, 0
    %p58 = por %p56, %p57
    %s59 = ssub.s32 %s18, %s30
    %p60 = scmp.eq.s32.totalorder %s59, 0
    %s62 = sadd.s32 %s61, 1
    %s63 = scalar_select %p60, %s61, %s62
    %p66 = pneg %p60
    %p67 = scmp.eq.s32.totalorder %s11, 1
    %p68 = por %p66, %p67
    %p69 = scmp.ne.s32.totalorder %s61, %s64
    %p70 = scmp.eq.s32.totalorder %s11, 0
    %p71 = por %p69, %p70
    %p72 = scmp.ne.s32.totalorder %s61, %s64
    %p73 = scmp.eq.s32.totalorder %s16, 1
    %p74 = por %p72, %p73
    %p75 = scmp.ne.s32.totalorder %s64, %s65
    %p76 = scmp.eq.s32.totalorder %s16, 0
    %p77 = por %p75, %p76
    %p78 = scmp.ne.s32.totalorder %s64, %s65
    %p79 = scmp.eq.s32.totalorder %s17, 1
    %p80 = por %p78, %p79
    %p82 = scmp.ne.s32.totalorder %s65, %s81
    %p83 = scmp.eq.s32.totalorder %s17, 0
    %p84 = por %p82, %p83
    %s85 = ssub.s32 %s18, %s30
    %p86 = scmp.eq.s32.totalorder %s85, 0
    %s88 = sadd.s32 %s87, 1
    %s89 = scalar_select %p86, %s87, %s88
    %p92 = pneg %p86
    %p93 = scmp.eq.s32.totalorder %s11, 1
    %p94 = por %p92, %p93
    %p95 = scmp.ne.s32.totalorder %s87, %s90
    %p96 = scmp.eq.s32.totalorder %s11, 0
    %p97 = por %p95, %p96
    %p98 = scmp.ne.s32.totalorder %s87, %s90
    %p99 = scmp.eq.s32.totalorder %s16, 1
    %p100 = por %p98, %p99
    %p101 = scmp.ne.s32.totalorder %s90, %s91
    %p102 = scmp.eq.s32.totalorder %s16, 0
    %p103 = por %p101, %p102
    %p104 = scmp.ne.s32.totalorder %s90, %s91
    %p105 = scmp.eq.s32.totalorder %s17, 1
    %p106 = por %p104, %p105
    %p108 = scmp.ne.s32.totalorder %s91, %s107
    %p109 = scmp.eq.s32.totalorder %s17, 0
    %p110 = por %p108, %p109
    %s111 = ssub.s32 %s18, %s30
    %s112 = ssub.s32 %s19, %s26
    %s113 = sor.u32 %s111, %s112
    %p114 = scmp.eq.s32.totalorder %s113, 0
    %s116 = sadd.s32 %s115, 1
    %s117 = scalar_select %p114, %s115, %s116
    %p120 = pneg %p114
    %p121 = scmp.eq.s32.totalorder %s11, 1
    %p122 = por %p120, %p121
    %p123 = scmp.ne.s32.totalorder %s115, %s118
    %p124 = scmp.eq.s32.totalorder %s11, 0
    %p125 = por %p123, %p124
    %p126 = scmp.ne.s32.totalorder %s115, %s118
    %p127 = scmp.eq.s32.totalorder %s16, 1
    %p128 = por %p126, %p127
    %p129 = scmp.ne.s32.totalorder %s118, %s119
    %p130 = scmp.eq.s32.totalorder %s16, 0
    %p131 = por %p129, %p130
    %p132 = scmp.ne.s32.totalorder %s118, %s119
    %p133 = scmp.eq.s32.totalorder %s17, 1
    %p134 = por %p132, %p133
    %p136 = scmp.ne.s32.totalorder %s119, %s135
    %p137 = scmp.eq.s32.totalorder %s17, 0
    %p138 = por %p136, %p137
    %s139 = ssub.s32 %s18, %s30
    %s140 = ssub.s32 %s19, %s26
    %s141 = sor.u32 %s139, %s140
    %p142 = scmp.eq.s32.totalorder %s141, 0
    %s144 = sadd.s32 %s143, 1
    %s145 = scalar_select %p142, %s143, %s144
    %p148 = pneg %p142
    %p149 = scmp.eq.s32.totalorder %s11, 1
    %p150 = por %p148, %p149
    %p151 = scmp.ne.s32.totalorder %s143, %s146
    %p152 = scmp.eq.s32.totalorder %s11, 0
    %p153 = por %p151, %p152
    %p154 = scmp.ne.s32.totalorder %s143, %s146
    %p155 = scmp.eq.s32.totalorder %s16, 1
    %p156 = por %p154, %p155
    %p157 = scmp.ne.s32.totalorder %s146, %s147
    %p158 = scmp.eq.s32.totalorder %s16, 0
    %p159 = por %p157, %p158
    %p160 = scmp.ne.s32.totalorder %s146, %s147
    %p161 = scmp.eq.s32.totalorder %s17, 1
    %p162 = por %p160, %p161
    %p164 = scmp.ne.s32.totalorder %s147, %s163
    %p165 = scmp.eq.s32.totalorder %s17, 0
    %p166 = por %p164, %p165
    %p167 = scmp.le.s32.totalorder 1, %s11
    %p168 = scmp.lt.s32.totalorder %s11, 3
    %p169 = pnand %p167, %p168
    %p170 = pneg %p169
    // Predicated region
    $region9: #{gated_mhsa_pallas.4} parent=5 // pred_check
      _
    $region10: #{gated_mhsa_pallas.4} parent=5 // pred_check_branch
      %172 = sbr.rel (%p169) target = $region12
    $region11: #{gated_mhsa_pallas.4} parent=5 // pred_region
      %s173 = ssub.s32 %s11, 1
      // Predicated region
      $region13: #{gated_mhsa_pallas.4} parent=11 // pred_check
        %p174 = pneg %p77
      $region14: #{gated_mhsa_pallas.4} parent=11 // pred_check_branch
        %176 = sbr.rel (%p174) target = $region16
      $region15: #{gated_mhsa_pallas.4} parent=11 // pred_region
        %p177 = scmp.lt.s32.totalorder %s20, 1
        %s178 = scalar_select %p177, %s20, 1
        %s179 = sadd.s32 %s178, 2
        %s180 = smul.addr %s179, 8
        %s181 = scalar_lea.vmem %s1, %s180
      $region16: #{gated_mhsa_pallas.4} parent=11 // pred_fallthru
        _
      // Predicated region
      $region17: #{gated_mhsa_pallas.4} parent=11 // pred_check
        %p182 = pneg %p103
      $region18: #{gated_mhsa_pallas.4} parent=11 // pred_check_branch
        %184 = sbr.rel (%p182) target = $region20
      $region19: #{gated_mhsa_pallas.4} parent=11 // pred_region
        %p185 = scmp.lt.s32.totalorder %s20, 1
        %s186 = scalar_select %p185, %s20, 1
        %s187 = sadd.s32 %s186, 4
        %s188 = smul.addr %s187, 8
        %s189 = scalar_lea.vmem %s2, %s188
      $region20: #{gated_mhsa_pallas.4} parent=11 // pred_fallthru
        _
    $region12: #{gated_mhsa_pallas.4} parent=5 // pred_fallthru
      _
    %p190 = scmp.lt.s32.totalorder %s11, 2
    // Predicated region
    $region21: #{gated_mhsa_pallas.4} parent=5 // pred_check
      %p191 = pneg %p190
    $region22: #{gated_mhsa_pallas.4} parent=5 // pred_check_branch
      %193 = sbr.rel (%p191) target = $region24
    $region23: #{gated_mhsa_pallas.4} parent=5 // pred_region
      // Predicated region
      $region25: #{gated_mhsa_pallas.4} parent=23 // pred_check
        %p194 = pneg %p45
      $region26: #{gated_mhsa_pallas.4} parent=23 // pred_check_branch
        %196 = sbr.rel (%p194) target = $region28
      $region27: #{gated_mhsa_pallas.4} parent=23 // pred_region
        %p197 = scmp.lt.s32.totalorder %s18, 1
        %s198 = scalar_select %p197, %s18, 1
        %p199 = scmp.lt.s32.totalorder %s19, 0
        %s200 = scalar_select %p199, %s19, 0
        %s201 = sadd.s32 %s200, %s198
        %s202 = smul.addr %s201, 8
        %s203 = scalar_lea.vmem %s0, %s202
      $region28: #{gated_mhsa_pallas.4} parent=23 // pred_fallthru
        _
    $region24: #{gated_mhsa_pallas.4} parent=5 // pred_fallthru
      _
    %p204 = scmp.le.s32.totalorder 1, %s11
    %p205 = scmp.lt.s32.totalorder %s11, 3
    %p206 = pnand %p204, %p205
    %p207 = pneg %p206
    // Predicated region
    $region29: #{gated_mhsa_pallas.4} parent=5 // pred_check
      _
    $region30: #{gated_mhsa_pallas.4} parent=5 // pred_check_branch
      %209 = sbr.rel (%p206) target = $region32
    $region31: #{gated_mhsa_pallas.4} parent=5 // pred_region
      %s210 = ssub.s32 %s11, 1
      %p211 = scmp.lt.s32.totalorder %s20, 1
      %s212 = scalar_select %p211, %s20, 1
      %p213 = scmp.lt.s32.totalorder %s21, 0
      %s214 = scalar_select %p213, %s21, 0
      %s215 = sadd.s32 %s214, %s212
      %s216 = smul.addr %s215, 8
      %s217 = scalar_lea.vmem %s0, %s216
      %p218 = pneg %p51
      %p219 = pneg %p48
      %p220 = scmp.lt.s32.totalorder %s20, 1
      %s221 = scalar_select %p220, %s20, 1
      %s222 = sadd.s32 %s221, 2
      %s223 = smul.addr %s222, 8
      %s224 = scalar_lea.vmem %s1, %s223
      %p225 = pneg %p77
      %p226 = pneg %p74
      %p227 = scmp.lt.s32.totalorder %s20, 1
      %s228 = scalar_select %p227, %s20, 1
      %s229 = sadd.s32 %s228, 4
      %s230 = smul.addr %s229, 8
      %s231 = scalar_lea.vmem %s2, %s230
      %p232 = pneg %p103
      %p233 = pneg %p100
      %p234 = pneg %p131
      %p235 = pneg %p128
      %p236 = scmp.lt.s32.totalorder %s20, 1
      %s237 = scalar_select %p236, %s20, 1
      %p238 = scmp.lt.s32.totalorder %s21, 0
      %s239 = scalar_select %p238, %s21, 0
      %s240 = sadd.s32 %s239, %s237
      %s241 = smul.addr %s240, 8
      %s242 = scalar_lea.vmem %s3, %s241
      %p243 = pneg %p159
      %p244 = pneg %p156
      %p245 = scmp.lt.s32.totalorder %s20, 1
      %s246 = scalar_select %p245, %s20, 1
      %p247 = scmp.lt.s32.totalorder %s21, 0
      %s248 = scalar_select %p247, %s21, 0
      %s249 = sadd.s32 %s248, %s246
      %s250 = smul.addr %s249, 8
      %s251 = scalar_lea.vmem %s4, %s250
      %p252 = scmp.lt.s32.totalorder %s20, 1
      %s253 = scalar_select %p252, %s20, 1
      %p254 = scmp.lt.s32.totalorder %s21, 0
      %s255 = scalar_select %p254, %s21, 0
      %s256 = sadd.s32 %s255, %s253
      %s257 = smul.addr %s256, 8
      %s258 = scalar_lea.vmem %s0, %s257
      %p259 = scmp.lt.s32.totalorder %s20, 1
      %s260 = scalar_select %p259, %s20, 1
      %s261 = sadd.s32 %s260, 2
      %s262 = smul.addr %s261, 8
      %s263 = scalar_lea.vmem %s1, %s262
      %p264 = scmp.lt.s32.totalorder %s20, 1
      %s265 = scalar_select %p264, %s20, 1
      %s266 = sadd.s32 %s265, 4
      %s267 = smul.addr %s266, 8
      %s268 = scalar_lea.vmem %s2, %s267
      %p269 = scmp.lt.s32.totalorder %s20, 1
      %s270 = scalar_select %p269, %s20, 1
      %p271 = scmp.lt.s32.totalorder %s21, 0
      %s272 = scalar_select %p271, %s21, 0
      %s273 = sadd.s32 %s272, %s270
      %s274 = smul.addr %s273, 8
      %s275 = scalar_lea.vmem %s3, %s274
      %p276 = scmp.lt.s32.totalorder %s20, 1
      %s277 = scalar_select %p276, %s20, 1
      %p278 = scmp.lt.s32.totalorder %s21, 0
      %s279 = scalar_select %p278, %s21, 0
      %s280 = sadd.s32 %s279, %s277
      %s281 = smul.addr %s280, 8
      %s282 = scalar_lea.vmem %s4, %s281
      %v283 = vld [vmem:[%s258] sm:$0xff]
      %v284 = vld [vmem:[%s263] sm:$0xff]
      %v285 = vld [vmem:[%s268] sm:$0xff]
      %vm286 = vcmask 64512
      %v288 = vsel %vm286, %v283, 0
      %v291 = vsel %vm286, %v284, 0
      %293 = vmatpush.xpose.msra.mxu0 0.0
      %294 = vmatpush.xpose.msra.mxu0 0.0
      %295 = vmatpush.xpose.msra.mxu0 0.0
      %296 = vmatpush.xpose.msra.mxu0 0.0
      %297 = vmatpush.xpose.msra.mxu0 0.0
      %298 = vmatpush.xpose.msra.mxu0 0.0
      %299 = vmatpush.xpose.msra.mxu0 0.0
      %300 = vmatpush.xpose.msra.mxu0 0.0
      %301 = vmatpush.xpose.msra.mxu0 0.0
      %302 = vmatpush.xpose.msra.mxu0 0.0
      %303 = vmatpush.xpose.msra.mxu0 0.0
      %304 = vmatpush.xpose.msra.mxu0 0.0
      %305 = vmatpush.xpose.msra.mxu0 0.0
      %306 = vmatpush.xpose.msra.mxu0 0.0
      %307 = vmatpush.xpose.msra.mxu0 0.0
      %308 = vmatpush.xpose.msra.mxu0 %v291
      %309 = vmatmul.f32.gmra.mxu0 %v288
      %v310 = vpop.f32.mrf.mxu0
      %v311 = vadd.f32 0.0, %v310
      %312 = vdwg.mxu0
      %v313 = vsel %vm286, %v311, -inf
      %314 = vmax.xlane.f32.xlu0 %v313
      %v315 = vpop.xlane.xlu0 %314
      %v316 = vsub.f32 %v311, %v315
      %v317 = vmul.f32 %v316, 1.442695
      %v318 = vpow.pop %v317
      %v319 = vsel %vm286, %v318, 0.0
      %320 = vadd.xlane.f32.xlu0 %v319
      %v321 = vpop.xlane.xlu0 %320
      %v322 = vrcp.pop %v321
      %v323 = vmul.f32 %v318, %v322
      %v325 = vsel %vm286, %v323, 0
      %327 = vmatpush.msra.mxu0 0.0
      %328 = vmatpush.msra.mxu0 0.0
      %329 = vmatpush.msra.mxu0 0.0
      %330 = vmatpush.msra.mxu0 0.0
      %331 = vmatpush.msra.mxu0 0.0
      %332 = vmatpush.msra.mxu0 0.0
      %333 = vmatpush.msra.mxu0 0.0
      %334 = vmatpush.msra.mxu0 0.0
      %335 = vmatpush.msra.mxu0 0.0
      %336 = vmatpush.msra.mxu0 0.0
      %337 = vmatpush.msra.mxu0 0.0
      %338 = vmatpush.msra.mxu0 0.0
      %339 = vmatpush.msra.mxu0 0.0
      %340 = vmatpush.msra.mxu0 0.0
      %341 = vmatpush.msra.mxu0 0.0
      %342 = vmatpush.msra.mxu0 %v285
      %343 = vmatmul.f32.gmra.mxu0 %v325
      %v344 = vpop.f32.mrf.mxu0
      %v345 = vadd.f32 0.0, %v344
      %346 = vdwg.mxu0
      %347 = vst.msk [vmem:[%s275] sm:$0xff] %vm286, %v345
      %v348 = vmul.f32 %v345, %v345
      %v349 = vsel %vm286, %v348, 0.0
      %350 = vadd.xlane.f32.xlu0 %v349
      %v351 = vpop.xlane.xlu0 %350
      %v352 = vrsqrt.pop %v351
      %v353 = vmul.f32 %v352, %v351
      %v354 = vmul.f32 %v353, %v352
      %v355 = vmul.f32 0.5, %v354
      %v356 = vsub.f32 1.5, %v355
      %v357 = vmul.f32 %v352, %v356
      %v358 = vmul.f32 %v351, %v357
      %vm359 = vcmp.eq.f32.partialorder %v351, inf
      %v360 = vsel %vm359, %v351, %v358
      %vm361 = vcmp.eq.f32.partialorder %v351, 0.0
      %v362 = vand.u32 %v351, 2147483648
      %v363 = vsel %vm361, %v362, %v360
      %364 = vrot.lane.b32.xlu0 %v283, 120
      %v365 = vpop.permute.xlu0 %364
      %366 = vrot.lane.b32.xlu0 %v284, 120
      %v367 = vpop.permute.xlu0 %366
      %v368 = vsel %vm286, %v365, 0
      %v370 = vsel %vm286, %v367, 0
      %372 = vmatpush.xpose.msra.mxu0 0.0
      %373 = vmatpush.xpose.msra.mxu0 0.0
      %374 = vmatpush.xpose.msra.mxu0 0.0
      %375 = vmatpush.xpose.msra.mxu0 0.0
      %376 = vmatpush.xpose.msra.mxu0 0.0
      %377 = vmatpush.xpose.msra.mxu0 0.0
      %378 = vmatpush.xpose.msra.mxu0 0.0
      %379 = vmatpush.xpose.msra.mxu0 0.0
      %380 = vmatpush.xpose.msra.mxu0 0.0
      %381 = vmatpush.xpose.msra.mxu0 0.0
      %382 = vmatpush.xpose.msra.mxu0 0.0
      %383 = vmatpush.xpose.msra.mxu0 0.0
      %384 = vmatpush.xpose.msra.mxu0 0.0
      %385 = vmatpush.xpose.msra.mxu0 0.0
      %386 = vmatpush.xpose.msra.mxu0 0.0
      %387 = vmatpush.xpose.msra.mxu0 %v370
      %388 = vmatmul.f32.gmra.mxu0 %v368
      %v389 = vpop.f32.mrf.mxu0
      %v390 = vadd.f32 0.0, %v389
      %391 = vdwg.mxu0
      %v392 = vsel %vm286, %v390, -inf
      %393 = vmax.xlane.f32.xlu0 %v392
      %v394 = vpop.xlane.xlu0 %393
      %v395 = vsub.f32 %v390, %v394
      %v396 = vmul.f32 %v395, 1.442695
      %v397 = vpow.pop %v396
      %v398 = vsel %vm286, %v397, 0.0
      %399 = vadd.xlane.f32.xlu0 %v398
      %v400 = vpop.xlane.xlu0 %399
      %v401 = vrcp.pop %v400
      %v402 = vmul.f32 %v397, %v401
      %404 = vrot.lane.b32.xlu0 %v285, 120
      %v405 = vpop.permute.xlu0 %404
      %v408 = vsel %vm286, %v402, 0
      %410 = vmatpush.msra.mxu0 0.0
      %411 = vmatpush.msra.mxu0 0.0
      %412 = vmatpush.msra.mxu0 0.0
      %413 = vmatpush.msra.mxu0 0.0
      %414 = vmatpush.msra.mxu0 0.0
      %415 = vmatpush.msra.mxu0 0.0
      %416 = vmatpush.msra.mxu0 0.0
      %417 = vmatpush.msra.mxu0 0.0
      %418 = vmatpush.msra.mxu0 0.0
      %419 = vmatpush.msra.mxu0 0.0
      %420 = vmatpush.msra.mxu0 0.0
      %421 = vmatpush.msra.mxu0 0.0
      %422 = vmatpush.msra.mxu0 0.0
      %423 = vmatpush.msra.mxu0 0.0
      %424 = vmatpush.msra.mxu0 0.0
      %425 = vmatpush.msra.mxu0 %v405
      %426 = vmatmul.f32.gmra.mxu0 %v408
      %v427 = vpop.f32.mrf.mxu0
      %v428 = vadd.f32 0.0, %v427
      %429 = vdwg.mxu0
      %431 = vrot.lane.b32.xlu0 %v428, 8
      %v432 = vpop.permute.xlu0 %431
      %vm434 = vcmask 130112
      %435 = vst.msk [vmem:[%s275] sm:$0xff] %vm434, %v432
      %v436 = vmul.f32 %v428, %v428
      %v437 = vsel %vm286, %v436, 0.0
      %438 = vadd.xlane.f32.xlu0 %v437
      %v439 = vpop.xlane.xlu0 %438
      %v440 = vrsqrt.pop %v439
      %v441 = vmul.f32 %v440, %v439
      %v442 = vmul.f32 %v441, %v440
      %v443 = vmul.f32 0.5, %v442
      %v444 = vsub.f32 1.5, %v443
      %v445 = vmul.f32 %v440, %v444
      %v446 = vmul.f32 %v439, %v445
      %vm447 = vcmp.eq.f32.partialorder %v439, inf
      %v448 = vsel %vm447, %v439, %v446
      %vm449 = vcmp.eq.f32.partialorder %v439, 0.0
      %v450 = vand.u32 %v439, 2147483648
      %v451 = vsel %vm449, %v450, %v448
      %452 = vrot.lane.b32.xlu0 %v283, 112
      %v453 = vpop.permute.xlu0 %452
      %454 = vrot.lane.b32.xlu0 %v284, 112
      %v455 = vpop.permute.xlu0 %454
      %v456 = vsel %vm286, %v453, 0
      %v458 = vsel %vm286, %v455, 0
      %460 = vmatpush.xpose.msra.mxu0 0.0
      %461 = vmatpush.xpose.msra.mxu0 0.0
      %462 = vmatpush.xpose.msra.mxu0 0.0
      %463 = vmatpush.xpose.msra.mxu0 0.0
      %464 = vmatpush.xpose.msra.mxu0 0.0
      %465 = vmatpush.xpose.msra.mxu0 0.0
      %466 = vmatpush.xpose.msra.mxu0 0.0
      %467 = vmatpush.xpose.msra.mxu0 0.0
      %468 = vmatpush.xpose.msra.mxu0 0.0
      %469 = vmatpush.xpose.msra.mxu0 0.0
      %470 = vmatpush.xpose.msra.mxu0 0.0
      %471 = vmatpush.xpose.msra.mxu0 0.0
      %472 = vmatpush.xpose.msra.mxu0 0.0
      %473 = vmatpush.xpose.msra.mxu0 0.0
      %474 = vmatpush.xpose.msra.mxu0 0.0
      %475 = vmatpush.xpose.msra.mxu0 %v458
      %476 = vmatmul.f32.gmra.mxu0 %v456
      %v477 = vpop.f32.mrf.mxu0
      %v478 = vadd.f32 0.0, %v477
      %479 = vdwg.mxu0
      %v480 = vsel %vm286, %v478, -inf
      %481 = vmax.xlane.f32.xlu0 %v480
      %v482 = vpop.xlane.xlu0 %481
      %v483 = vsub.f32 %v478, %v482
      %v484 = vmul.f32 %v483, 1.442695
      %v485 = vpow.pop %v484
      %v486 = vsel %vm286, %v485, 0.0
      %487 = vadd.xlane.f32.xlu0 %v486
      %v488 = vpop.xlane.xlu0 %487
      %v489 = vrcp.pop %v488
      %v490 = vmul.f32 %v485, %v489
      %491 = vrot.lane.b32.xlu0 %v285, 112
      %v492 = vpop.permute.xlu0 %491
      %v495 = vsel %vm286, %v490, 0
      %497 = vmatpush.msra.mxu0 0.0
      %498 = vmatpush.msra.mxu0 0.0
      %499 = vmatpush.msra.mxu0 0.0
      %500 = vmatpush.msra.mxu0 0.0
      %501 = vmatpush.msra.mxu0 0.0
      %502 = vmatpush.msra.mxu0 0.0
      %503 = vmatpush.msra.mxu0 0.0
      %504 = vmatpush.msra.mxu0 0.0
      %505 = vmatpush.msra.mxu0 0.0
      %506 = vmatpush.msra.mxu0 0.0
      %507 = vmatpush.msra.mxu0 0.0
      %508 = vmatpush.msra.mxu0 0.0
      %509 = vmatpush.msra.mxu0 0.0
      %510 = vmatpush.msra.mxu0 0.0
      %511 = vmatpush.msra.mxu0 0.0
      %512 = vmatpush.msra.mxu0 %v492
      %513 = vmatmul.f32.gmra.mxu0 %v495
      %v514 = vpop.f32.mrf.mxu0
      %v515 = vadd.f32 0.0, %v514
      %516 = vdwg.mxu0
      %518 = vrot.lane.b32.xlu0 %v515, 16
      %v519 = vpop.permute.xlu0 %518
      %vm521 = vcmask 195712
      %522 = vst.msk [vmem:[%s275] sm:$0xff] %vm521, %v519
      %v523 = vmul.f32 %v515, %v515
      %v524 = vsel %vm286, %v523, 0.0
      %525 = vadd.xlane.f32.xlu0 %v524
      %v526 = vpop.xlane.xlu0 %525
      %v527 = vrsqrt.pop %v526
      %v528 = vmul.f32 %v527, %v526
      %v529 = vmul.f32 %v528, %v527
      %v530 = vmul.f32 0.5, %v529
      %v531 = vsub.f32 1.5, %v530
      %v532 = vmul.f32 %v527, %v531
      %v533 = vmul.f32 %v526, %v532
      %vm534 = vcmp.eq.f32.partialorder %v526, inf
      %v535 = vsel %vm534, %v526, %v533
      %vm536 = vcmp.eq.f32.partialorder %v526, 0.0
      %v537 = vand.u32 %v526, 2147483648
      %v538 = vsel %vm536, %v537, %v535
      %539 = vrot.lane.b32.xlu0 %v283, 104
      %v540 = vpop.permute.xlu0 %539
      %541 = vrot.lane.b32.xlu0 %v284, 104
      %v542 = vpop.permute.xlu0 %541
      %v543 = vsel %vm286, %v540, 0
      %v545 = vsel %vm286, %v542, 0
      %547 = vmatpush.xpose.msra.mxu0 0.0
      %548 = vmatpush.xpose.msra.mxu0 0.0
      %549 = vmatpush.xpose.msra.mxu0 0.0
      %550 = vmatpush.xpose.msra.mxu0 0.0
      %551 = vmatpush.xpose.msra.mxu0 0.0
      %552 = vmatpush.xpose.msra.mxu0 0.0
      %553 = vmatpush.xpose.msra.mxu0 0.0
      %554 = vmatpush.xpose.msra.mxu0 0.0
      %555 = vmatpush.xpose.msra.mxu0 0.0
      %556 = vmatpush.xpose.msra.mxu0 0.0
      %557 = vmatpush.xpose.msra.mxu0 0.0
      %558 = vmatpush.xpose.msra.mxu0 0.0
      %559 = vmatpush.xpose.msra.mxu0 0.0
      %560 = vmatpush.xpose.msra.mxu0 0.0
      %561 = vmatpush.xpose.msra.mxu0 0.0
      %562 = vmatpush.xpose.msra.mxu0 %v545
      %563 = vmatmul.f32.gmra.mxu0 %v543
      %v564 = vpop.f32.mrf.mxu0
      %v565 = vadd.f32 0.0, %v564
      %566 = vdwg.mxu0
      %v567 = vsel %vm286, %v565, -inf
      %568 = vmax.xlane.f32.xlu0 %v567
      %v569 = vpop.xlane.xlu0 %568
      %v570 = vsub.f32 %v565, %v569
      %v571 = vmul.f32 %v570, 1.442695
      %v572 = vpow.pop %v571
      %v573 = vsel %vm286, %v572, 0.0
      %574 = vadd.xlane.f32.xlu0 %v573
      %v575 = vpop.xlane.xlu0 %574
      %v576 = vrcp.pop %v575
      %v577 = vmul.f32 %v572, %v576
      %578 = vrot.lane.b32.xlu0 %v285, 104
      %v579 = vpop.permute.xlu0 %578
      %v582 = vsel %vm286, %v577, 0
      %584 = vmatpush.msra.mxu0 0.0
      %585 = vmatpush.msra.mxu0 0.0
      %586 = vmatpush.msra.mxu0 0.0
      %587 = vmatpush.msra.mxu0 0.0
      %588 = vmatpush.msra.mxu0 0.0
      %589 = vmatpush.msra.mxu0 0.0
      %590 = vmatpush.msra.mxu0 0.0
      %591 = vmatpush.msra.mxu0 0.0
      %592 = vmatpush.msra.mxu0 0.0
      %593 = vmatpush.msra.mxu0 0.0
      %594 = vmatpush.msra.mxu0 0.0
      %595 = vmatpush.msra.mxu0 0.0
      %596 = vmatpush.msra.mxu0 0.0
      %597 = vmatpush.msra.mxu0 0.0
      %598 = vmatpush.msra.mxu0 0.0
      %599 = vmatpush.msra.mxu0 %v579
      %600 = vmatmul.f32.gmra.mxu0 %v582
      %v601 = vpop.f32.mrf.mxu0
      %v602 = vadd.f32 0.0, %v601
      %603 = vdwg.mxu0
      %605 = vrot.lane.b32.xlu0 %v602, 24
      %v606 = vpop.permute.xlu0 %605
      %vm608 = vcmask 261312
      %609 = vst.msk [vmem:[%s275] sm:$0xff] %vm608, %v606
      %v610 = vmul.f32 %v602, %v602
      %v611 = vsel %vm286, %v610, 0.0
      %612 = vadd.xlane.f32.xlu0 %v611
      %v613 = vpop.xlane.xlu0 %612
      %v614 = vrsqrt.pop %v613
      %v615 = vmul.f32 %v614, %v613
      %v616 = vmul.f32 %v615, %v614
      %v617 = vmul.f32 0.5, %v616
      %v618 = vsub.f32 1.5, %v617
      %v619 = vmul.f32 %v614, %v618
      %v620 = vmul.f32 %v613, %v619
      %vm621 = vcmp.eq.f32.partialorder %v613, inf
      %v622 = vsel %vm621, %v613, %v620
      %vm623 = vcmp.eq.f32.partialorder %v613, 0.0
      %v624 = vand.u32 %v613, 2147483648
      %v625 = vsel %vm623, %v624, %v622
      %vm626 = vcmask 7168
      %v627 = vsel %vm626, %v363, %v451
      %vm628 = vcmask 15360
      %v629 = vsel %vm628, %v627, %v538
      %vm630 = vcmask 23552
      %v631 = vsel %vm630, %v629, %v625
      %vm632 = vcmask 31744
      %633 = vst.msk [vmem:[%s282] sm:$0xff] %vm632, %v631
      %p634 = scmp.lt.s32.totalorder %s20, 1
      %s635 = scalar_select %p634, %s20, 1
      %p636 = scmp.lt.s32.totalorder %s21, 0
      %s637 = scalar_select %p636, %s21, 0
      %s638 = sadd.s32 %s637, %s635
      %s639 = smul.addr %s638, 8
      %s640 = scalar_lea.vmem %s3, %s639
      %p641 = scmp.lt.s32.totalorder %s20, 1
      %s642 = scalar_select %p641, %s20, 1
      %p643 = scmp.lt.s32.totalorder %s21, 0
      %s644 = scalar_select %p643, %s21, 0
      %s645 = sadd.s32 %s644, %s642
      %s646 = smul.addr %s645, 8
      %s647 = scalar_lea.vmem %s4, %s646
      // Predicated region
      $region33: #{gated_mhsa_pallas.4} parent=31 // pred_check
        %p648 = pneg %p128
      $region34: #{gated_mhsa_pallas.4} parent=31 // pred_check_branch
        %650 = sbr.rel (%p648) target = $region36
      $region35: #{gated_mhsa_pallas.4} parent=31 // pred_region
        _
      $region36: #{gated_mhsa_pallas.4} parent=31 // pred_fallthru
        _
      // Predicated region
      $region37: #{gated_mhsa_pallas.4} parent=31 // pred_check
        %p651 = pneg %p156
      $region38: #{gated_mhsa_pallas.4} parent=31 // pred_check_branch
        %653 = sbr.rel (%p651) target = $region40
      $region39: #{gated_mhsa_pallas.4} parent=31 // pred_region
        _
      $region40: #{gated_mhsa_pallas.4} parent=31 // pred_fallthru
        _
    $region32: #{gated_mhsa_pallas.4} parent=5 // pred_fallthru
      _
    %p654 = scmp.le.s32.totalorder 2, %s11
    // Predicated region
    $region41: #{gated_mhsa_pallas.4} parent=5 // pred_check
      %p655 = pneg %p654
    $region42: #{gated_mhsa_pallas.4} parent=5 // pred_check_branch
      %657 = sbr.rel (%p655) target = $region44
    $region43: #{gated_mhsa_pallas.4} parent=5 // pred_region
      %s658 = ssub.s32 %s11, 2
      // Predicated region
      $region45: #{gated_mhsa_pallas.4} parent=43 // pred_check
        %p659 = pneg %p134
      $region46: #{gated_mhsa_pallas.4} parent=43 // pred_check_branch
        %661 = sbr.rel (%p659) target = $region48
      $region47: #{gated_mhsa_pallas.4} parent=43 // pred_region
        %p662 = scmp.lt.s32.totalorder %s22, 1
        %s663 = scalar_select %p662, %s22, 1
        %p664 = scmp.lt.s32.totalorder %s23, 0
        %s665 = scalar_select %p664, %s23, 0
        %s666 = sadd.s32 %s665, %s663
        %s667 = smul.addr %s666, 8
        %s668 = scalar_lea.vmem %s3, %s667
      $region48: #{gated_mhsa_pallas.4} parent=43 // pred_fallthru
        _
      // Predicated region
      $region49: #{gated_mhsa_pallas.4} parent=43 // pred_check
        %p669 = pneg %p162
      $region50: #{gated_mhsa_pallas.4} parent=43 // pred_check_branch
        %671 = sbr.rel (%p669) target = $region52
      $region51: #{gated_mhsa_pallas.4} parent=43 // pred_region
        %p672 = scmp.lt.s32.totalorder %s22, 1
        %s673 = scalar_select %p672, %s22, 1
        %p674 = scmp.lt.s32.totalorder %s23, 0
        %s675 = scalar_select %p674, %s23, 0
        %s676 = sadd.s32 %s675, %s673
        %s677 = smul.addr %s676, 8
        %s678 = scalar_lea.vmem %s4, %s677
      $region52: #{gated_mhsa_pallas.4} parent=43 // pred_fallthru
        _
    $region44: #{gated_mhsa_pallas.4} parent=5 // pred_fallthru
      _
  $region6: #{gated_mhsa_pallas.4} parent=0 // loop_footer
    %s15 = sadd.s32 1, %s11
  $region7: #{gated_mhsa_pallas.4} parent=0 // loop_footer_branch
    %10 = sbr.rel target = $region3
  $region8: #{gated_mhsa_pallas.4} parent=0 // loop_exit
    _

</llo_original>
